<compile_context>
chip_gen: v7x
topology: tpu7x:2x2x1
jax: 0.10.0
libtpu: 0.0.40
codegen_flags: <defaults>
</compile_context>

<pallas_src>
import math

import jax
import jax.numpy as jnp
from jax import lax
from jax.experimental import pallas as pl
from jax.experimental.pallas import tpu as pltpu

NUM_ARM = 8
FEATURE_DIMS = 6
TOTAL_NUM_TEST = 4
ALPHA = 0.25
R1 = 0.6
R0 = -16.0

A = NUM_ARM
D = FEATURE_DIMS
K = D * D
T = TOTAL_NUM_TEST

# ---------------- packed output slab layout: one (A, 128) f32 block ---------
LANES = 128
OFF_AAI = 0              # per-arm AaI, flattened row-major (K lanes)
OFF_AA = OFF_AAI + K     # per-arm Aa, flattened row-major (K lanes)
OFF_THETA = OFF_AA + K   # per-arm theta row (D lanes)
OFF_BA = OFF_THETA + D   # per-arm ba row (D lanes)
OFF_EST_UCB = OFF_BA + D
OFF_CNT_UCB = OFF_EST_UCB + A
OFF_EST_LIN = OFF_CNT_UCB + A
OFF_CNT_LIN = OFF_EST_LIN + A
OFF_TOT_UCB = OFF_CNT_LIN + A
OFF_TOT_LIN = OFF_TOT_UCB + 1
assert OFF_TOT_LIN + 1 <= LANES


def _any_eq(idx, values):
    m = idx == values[0]
    for v in values[1:]:
        m = m | (idx == v)
    return m


# ------------------------------ fused kernel ------------------------------- #

def bandit_fused_kernel(
    tr_ref,    # (1, A)   f32  true arm rewards                        VMEM
    xs_ref,    # (T, D)   f32  per-step user features                  VMEM
    u_ref,     # (2*T,)   f32  uniforms: [0:T] UCB, [T:2T] LinUCB      SMEM
    out_ref,   # (A, 128) f32  packed final state                      VMEM
):
    f32 = jnp.float32
    tr = tr_ref[...]                                               # (1, A)

    # ---- constants built once in-kernel (no HBM inputs for these) ----
    lane_arm = lax.broadcasted_iota(jnp.int32, (1, A), 1).astype(f32)
    sub_arm = lax.broadcasted_iota(jnp.int32, (A, 1), 0).astype(f32)

    kk = lax.broadcasted_iota(jnp.int32, (D, K), 1)                # lane k
    ii = lax.broadcasted_iota(jnp.int32, (D, K), 0)                # sublane i
    grp_mask = (kk >= ii * D) & (kk < ii * D + D)                  # k // D == i
    mod_mask = _any_eq(kk, [ii + m * D for m in range(D)])         # k %  D == i
    diag_dd = (lax.broadcasted_iota(jnp.int32, (D, D), 0)
               == lax.broadcasted_iota(jnp.int32, (D, D), 1))

    k_row = lax.broadcasted_iota(jnp.int32, (A, K), 1)
    eye_flat = _any_eq(k_row, [i * (D + 1) for i in range(D)]).astype(f32)  # (A,K)

    # ---- tiny layout helpers (VPU selects + XLU reduces, all single vregs) --
    def col_from_row(row):      # (1, D) -> (D, 1)
        return jnp.sum(jnp.where(diag_dd, jnp.broadcast_to(row, (D, D)), 0.0),
                       axis=1, keepdims=True)

    def row_from_col(col):      # (D, 1) -> (1, D)
        return jnp.sum(jnp.where(diag_dd, jnp.broadcast_to(col, (D, D)), 0.0),
                       axis=0, keepdims=True)

    def repeat_from_col(col):   # (D, 1) -> (1, K): out[k] = col[k // D]
        return jnp.sum(jnp.where(grp_mask, jnp.broadcast_to(col, (D, K)), 0.0),
                       axis=0, keepdims=True)

    def tile_from_col(col):     # (D, 1) -> (1, K): out[k] = col[k % D]
        return jnp.sum(jnp.where(mod_mask, jnp.broadcast_to(col, (D, K)), 0.0),
                       axis=0, keepdims=True)

    def group_sum(flat):        # (1, K) -> (D, 1): out[i] = sum_{k//D==i} flat[k]
        return jnp.sum(jnp.where(grp_mask, jnp.broadcast_to(flat, (D, K)), 0.0),
                       axis=1, keepdims=True)

    # ---- state carried in vregs across the unrolled step loop ----
    est_ucb = jnp.zeros((1, A), f32)
    cnt_ucb = jnp.zeros((1, A), f32)
    tot_ucb = jnp.zeros((1, 1), f32)
    est_lin = jnp.zeros((1, A), f32)
    cnt_lin = jnp.zeros((1, A), f32)
    tot_lin = jnp.zeros((1, 1), f32)
    theta = jnp.zeros((A, D), f32)        # theta[a] as a row
    ba = jnp.zeros((A, D), f32)           # ba[a] as a row
    aai = eye_flat                        # (A, K)  AaI[a] flattened
    aa = eye_flat                         # (A, K)  Aa[a]  flattened

    for t in range(T):
        # 2*log10(num_test) folded to a trace-time constant (num_test = t+1)
        two_log10_n = f32(2.0 * math.log10(float(t + 1)))

        # ================================ UCB ================================ #
        delta = jnp.where(cnt_ucb == 0.0, f32(1.0),
                          jnp.sqrt(two_log10_n / (cnt_ucb + 1e-8)))
        ub = est_ucb + delta                                          # (1, A)
        mx = jnp.max(ub, axis=1, keepdims=True)                       # (1, 1)
        item_u = jnp.min(jnp.where(ub >= mx, lane_arm, f32(A)),
                         axis=1, keepdims=True)                       # first argmax
        mask_u = lane_arm == item_u                                   # (1, A)

        p_u = jnp.sum(jnp.where(mask_u, tr, 0.0), axis=1, keepdims=True)
        reward_u = (u_ref[t] < p_u).astype(f32)                       # Bernoulli
        tot_ucb = tot_ucb + reward_u
        c_u = jnp.sum(jnp.where(mask_u, cnt_ucb, 0.0), axis=1, keepdims=True)
        e_u = jnp.sum(jnp.where(mask_u, est_ucb, 0.0), axis=1, keepdims=True)
        est_ucb = jnp.where(mask_u, (c_u * e_u + reward_u) / (c_u + 1.0), est_ucb)
        cnt_ucb = jnp.where(mask_u, c_u + 1.0, cnt_ucb)

        # =============================== LinUCB ============================== #
        x_row = xs_ref[pl.ds(t, 1), :]            # (1, D)
        x_col = col_from_row(x_row)               # (D, 1)
        xb = tile_from_col(x_col)                 # (1, K): x[k % D]
        xa = repeat_from_col(x_col)               # (1, K): x[k // D]
        xxt = xa * xb                             # (1, K): (x x^T) flattened

        # score[a] = theta_a . x + alpha * sqrt(x^T AaI_a x)
        score1 = jnp.sum(theta * x_row, axis=1, keepdims=True)        # (A, 1)
        quad = jnp.sum(aai * xxt, axis=1, keepdims=True)              # (A, 1)
        quad = jnp.maximum(quad, 0.0)                                 # fp insurance
        scores = score1 + ALPHA * jnp.sqrt(quad)                      # (A, 1)

        smx = jnp.max(scores, axis=0, keepdims=True)                  # (1, 1)
        item_l = jnp.min(jnp.where(scores >= smx, sub_arm, f32(A)),
                         axis=0, keepdims=True)                       # (1, 1)
        mask_lane = lane_arm == item_l                                # (1, A)
        mask_sub = sub_arm == item_l                                  # (A, 1)

        p_l = jnp.sum(jnp.where(mask_lane, tr, 0.0), axis=1, keepdims=True)
        reward_l = (u_ref[T + t] < p_l).astype(f32)                   # (1, 1)
        r = jnp.where(reward_l == 1.0, f32(R1), f32(R0))              # (1, 1)

        # selected arm's state (masked sublane reduces, no gathers)
        aai_sel = jnp.sum(jnp.where(mask_sub, aai, 0.0), axis=0, keepdims=True)    # (1, K)
        ba_sel = jnp.sum(jnp.where(mask_sub, ba, 0.0), axis=0, keepdims=True)      # (1, D)
        quad_sel = jnp.sum(jnp.where(mask_sub, quad, 0.0), axis=0, keepdims=True)  # (1, 1)

        # rank-1 updates; Sherman-Morrison replaces torch.inverse exactly:
        #   (Aa + x x^T)^-1 = AaI - (AaI x)(AaI x)^T / (1 + x^T AaI x)
        ba_new = ba_sel + r * x_row                                   # (1, D)
        z_col = group_sum(aai_sel * xb)                               # (D, 1) = AaI x
        zz = repeat_from_col(z_col) * tile_from_col(z_col)            # (1, K) = z z^T flat
        aai_new = aai_sel - zz / (1.0 + quad_sel)                     # (1, K)
        # theta_new = AaI_new @ ba_new (AaI_new symmetric), as a row
        ba_tiled = tile_from_col(col_from_row(ba_new))                # (1, K): ba_new[k % D]
        theta_new = row_from_col(group_sum(aai_new * ba_tiled))       # (1, D)

        # scatter back into the chosen arm's row of each flat slab
        aa = jnp.where(mask_sub, aa + xxt, aa)
        aai = jnp.where(mask_sub, aai_new, aai)
        ba = jnp.where(mask_sub, ba_new, ba)
        theta = jnp.where(mask_sub, theta_new, theta)

        # LinUCB reward bookkeeping
        tot_lin = tot_lin + reward_l
        c_l = jnp.sum(jnp.where(mask_lane, cnt_lin, 0.0), axis=1, keepdims=True)
        e_l = jnp.sum(jnp.where(mask_lane, est_lin, 0.0), axis=1, keepdims=True)
        est_lin = jnp.where(mask_lane, (c_l * e_l + reward_l) / (c_l + 1.0), est_lin)
        cnt_lin = jnp.where(mask_lane, c_l + 1.0, cnt_lin)

    # ---- single lane-dense (A, 128) writeback of the whole state ----
    out_ref[...] = jnp.zeros((A, LANES), f32)
    out_ref[:, OFF_AAI:OFF_AAI + K] = aai
    out_ref[:, OFF_AA:OFF_AA + K] = aa
    out_ref[:, OFF_THETA:OFF_THETA + D] = theta
    out_ref[:, OFF_BA:OFF_BA + D] = ba
    out_ref[:, OFF_EST_UCB:OFF_EST_UCB + A] = jnp.broadcast_to(est_ucb, (A, A))
    out_ref[:, OFF_CNT_UCB:OFF_CNT_UCB + A] = jnp.broadcast_to(cnt_ucb, (A, A))
    out_ref[:, OFF_EST_LIN:OFF_EST_LIN + A] = jnp.broadcast_to(est_lin, (A, A))
    out_ref[:, OFF_CNT_LIN:OFF_CNT_LIN + A] = jnp.broadcast_to(cnt_lin, (A, A))
    out_ref[:, OFF_TOT_UCB:OFF_TOT_UCB + 1] = jnp.broadcast_to(tot_ucb, (A, 1))
    out_ref[:, OFF_TOT_LIN:OFF_TOT_LIN + 1] = jnp.broadcast_to(tot_lin, (A, 1))


# -------------------------------- wrapper ----------------------------------- #

def _vmem():
    return pl.BlockSpec(memory_space=pltpu.MemorySpace.VMEM)


def _smem():
    return pl.BlockSpec(memory_space=pltpu.MemorySpace.SMEM)


@jax.jit
def bandit_forward(user_features, key):
    """Mirrors Bandit.forward: T steps of UCB + LinUCB, all in one kernel."""
    del user_features  # the reference overwrites features with randn_like
    f32 = jnp.float32
    k_tr, k_x, k_u = jax.random.split(key, 3)

    true_rewards = jax.random.uniform(k_tr, (1, A), f32, 0.0, 1.0)
    xs = jax.random.normal(k_x, (T, D), f32)        # fresh features per LinUCB step
    u = jax.random.uniform(k_u, (2 * T,), f32)      # Bernoulli draws: reward = (u < p)

    slab = pl.pallas_call(
        bandit_fused_kernel,
        out_shape=jax.ShapeDtypeStruct((A, LANES), f32),
        in_specs=[_vmem(), _vmem(), _smem()],
        out_specs=_vmem(),
    )(true_rewards, xs, u)

    aai = slab[:, OFF_AAI:OFF_AAI + K].reshape(A, D, D)
    aa = slab[:, OFF_AA:OFF_AA + K].reshape(A, D, D)
    theta = slab[:, OFF_THETA:OFF_THETA + D]
    ba = slab[:, OFF_BA:OFF_BA + D]

    return dict(
        true_rewards=true_rewards[0],
        estimated_rewards_ucb=slab[0, OFF_EST_UCB:OFF_EST_UCB + A],
        explore_count_ucb=slab[0, OFF_CNT_UCB:OFF_CNT_UCB + A],
        total_rewards_ucb=slab[0, OFF_TOT_UCB],
        estimated_rewards_linucb=slab[0, OFF_EST_LIN:OFF_EST_LIN + A],
        explore_count_linucb=slab[0, OFF_CNT_LIN:OFF_CNT_LIN + A],
        total_rewards_linucb=slab[0, OFF_TOT_LIN],
        theta=theta[:, :, None],        # (A, D, 1) -- torch layout
        AaI=aai,
        Aa=aa,
        ba=ba[:, :, None],              # (A, D, 1) -- torch layout
    )


# ---------------------------------- main ------------------------------------ #

if __name__ == "__main__":
    key = jax.random.PRNGKey(0)
    k_input, k_run = jax.random.split(key)
    # user_features: (feature_dims, 1), as implied by torch.mm(self.x, self.xT)
    user_features = jax.random.normal(k_input, (FEATURE_DIMS, 1), jnp.float32)

    state = bandit_forward(user_features, k_run)
    jax.block_until_ready(state)
    print("KERNEL_OK")
</pallas_src>

<mosaic_0001>
module attributes {stable_mosaic.version = 11 : i64} {
  func.func @bandit_fused_kernel(%arg0: memref<1x8xf32, #tpu.memory_space<vmem>>, %arg1: memref<4x6xf32, #tpu.memory_space<vmem>>, %arg2: memref<8xf32, #tpu.memory_space<smem>>, %arg3: memref<8x128xf32, #tpu.memory_space<vmem>>) attributes {dimension_semantics = [], scalar_prefetch = 0 : i64, scratch_operands = 0 : i64, tpu.core_type = #tpu.core_type<tc>} {
    %c0 = arith.constant 0 : index
    %c0_0 = arith.constant 0 : index
    %0 = vector.load %arg0[%c0, %c0_0] : memref<1x8xf32, #tpu.memory_space<vmem>>, vector<1x8xf32>
    %1 = tpu.iota {dimensions = array<i32: 1>} : vector<1x8xi32>
    %2 = arith.sitofp %1 : vector<1x8xi32> to vector<1x8xf32>
    %3 = tpu.iota {dimensions = array<i32: 0>} : vector<8x1xi32>
    %4 = arith.sitofp %3 : vector<8x1xi32> to vector<8x1xf32>
    %5 = tpu.iota {dimensions = array<i32: 1>} : vector<6x36xi32>
    %6 = tpu.iota {dimensions = array<i32: 0>} : vector<6x36xi32>
    %c6_i32 = arith.constant 6 : i32
    %7 = vector.broadcast %c6_i32 : i32 to vector<6x36xi32>
    %8 = arith.muli %6, %7 : vector<6x36xi32>
    %9 = arith.cmpi sge, %5, %8 : vector<6x36xi32>
    %c6_i32_1 = arith.constant 6 : i32
    %10 = vector.broadcast %c6_i32_1 : i32 to vector<6x36xi32>
    %11 = arith.muli %6, %10 : vector<6x36xi32>
    %c6_i32_2 = arith.constant 6 : i32
    %12 = vector.broadcast %c6_i32_2 : i32 to vector<6x36xi32>
    %13 = arith.addi %11, %12 : vector<6x36xi32>
    %14 = arith.cmpi slt, %5, %13 : vector<6x36xi32>
    %15 = arith.andi %9, %14 : vector<6x36xi1>
    %c0_i32 = arith.constant 0 : i32
    %16 = vector.broadcast %c0_i32 : i32 to vector<6x36xi32>
    %17 = arith.addi %6, %16 : vector<6x36xi32>
    %c6_i32_3 = arith.constant 6 : i32
    %18 = vector.broadcast %c6_i32_3 : i32 to vector<6x36xi32>
    %19 = arith.addi %6, %18 : vector<6x36xi32>
    %c12_i32 = arith.constant 12 : i32
    %20 = vector.broadcast %c12_i32 : i32 to vector<6x36xi32>
    %21 = arith.addi %6, %20 : vector<6x36xi32>
    %c18_i32 = arith.constant 18 : i32
    %22 = vector.broadcast %c18_i32 : i32 to vector<6x36xi32>
    %23 = arith.addi %6, %22 : vector<6x36xi32>
    %c24_i32 = arith.constant 24 : i32
    %24 = vector.broadcast %c24_i32 : i32 to vector<6x36xi32>
    %25 = arith.addi %6, %24 : vector<6x36xi32>
    %c30_i32 = arith.constant 30 : i32
    %26 = vector.broadcast %c30_i32 : i32 to vector<6x36xi32>
    %27 = arith.addi %6, %26 : vector<6x36xi32>
    %28 = arith.cmpi eq, %5, %17 : vector<6x36xi32>
    %29 = arith.cmpi eq, %5, %19 : vector<6x36xi32>
    %30 = arith.ori %28, %29 : vector<6x36xi1>
    %31 = arith.cmpi eq, %5, %21 : vector<6x36xi32>
    %32 = arith.ori %30, %31 : vector<6x36xi1>
    %33 = arith.cmpi eq, %5, %23 : vector<6x36xi32>
    %34 = arith.ori %32, %33 : vector<6x36xi1>
    %35 = arith.cmpi eq, %5, %25 : vector<6x36xi32>
    %36 = arith.ori %34, %35 : vector<6x36xi1>
    %37 = arith.cmpi eq, %5, %27 : vector<6x36xi32>
    %38 = arith.ori %36, %37 : vector<6x36xi1>
    %39 = tpu.iota {dimensions = array<i32: 0>} : vector<6x6xi32>
    %40 = tpu.iota {dimensions = array<i32: 1>} : vector<6x6xi32>
    %41 = arith.cmpi eq, %39, %40 : vector<6x6xi32>
    %42 = tpu.iota {dimensions = array<i32: 1>} : vector<8x36xi32>
    %c0_i32_4 = arith.constant 0 : i32
    %43 = vector.broadcast %c0_i32_4 : i32 to vector<8x36xi32>
    %44 = arith.cmpi eq, %42, %43 : vector<8x36xi32>
    %c7_i32 = arith.constant 7 : i32
    %45 = vector.broadcast %c7_i32 : i32 to vector<8x36xi32>
    %46 = arith.cmpi eq, %42, %45 : vector<8x36xi32>
    %47 = arith.ori %44, %46 : vector<8x36xi1>
    %c14_i32 = arith.constant 14 : i32
    %48 = vector.broadcast %c14_i32 : i32 to vector<8x36xi32>
    %49 = arith.cmpi eq, %42, %48 : vector<8x36xi32>
    %50 = arith.ori %47, %49 : vector<8x36xi1>
    %c21_i32 = arith.constant 21 : i32
    %51 = vector.broadcast %c21_i32 : i32 to vector<8x36xi32>
    %52 = arith.cmpi eq, %42, %51 : vector<8x36xi32>
    %53 = arith.ori %50, %52 : vector<8x36xi1>
    %c28_i32 = arith.constant 28 : i32
    %54 = vector.broadcast %c28_i32 : i32 to vector<8x36xi32>
    %55 = arith.cmpi eq, %42, %54 : vector<8x36xi32>
    %56 = arith.ori %53, %55 : vector<8x36xi1>
    %c35_i32 = arith.constant 35 : i32
    %57 = vector.broadcast %c35_i32 : i32 to vector<8x36xi32>
    %58 = arith.cmpi eq, %42, %57 : vector<8x36xi32>
    %59 = arith.ori %56, %58 : vector<8x36xi1>
    %60 = arith.extui %59 : vector<8x36xi1> to vector<8x36xi32>
    %61 = arith.sitofp %60 : vector<8x36xi32> to vector<8x36xf32>
    %cst = arith.constant 0.000000e+00 : f32
    %62 = vector.broadcast %cst : f32 to vector<1x8xf32>
    %cst_5 = arith.constant 0.000000e+00 : f32
    %63 = vector.broadcast %cst_5 : f32 to vector<1x8xf32>
    %cst_6 = arith.constant 0.000000e+00 : f32
    %64 = vector.broadcast %cst_6 : f32 to vector<1x1xf32>
    %cst_7 = arith.constant 0.000000e+00 : f32
    %65 = vector.broadcast %cst_7 : f32 to vector<1x8xf32>
    %cst_8 = arith.constant 0.000000e+00 : f32
    %66 = vector.broadcast %cst_8 : f32 to vector<1x8xf32>
    %cst_9 = arith.constant 0.000000e+00 : f32
    %67 = vector.broadcast %cst_9 : f32 to vector<1x1xf32>
    %cst_10 = arith.constant 0.000000e+00 : f32
    %68 = vector.broadcast %cst_10 : f32 to vector<8x6xf32>
    %cst_11 = arith.constant 0.000000e+00 : f32
    %69 = vector.broadcast %cst_11 : f32 to vector<8x6xf32>
    %cst_12 = arith.constant 0.000000e+00 : f32
    %70 = vector.broadcast %cst_12 : f32 to vector<1x8xf32>
    %71 = arith.cmpf oeq, %63, %70 : vector<1x8xf32>
    %cst_13 = arith.constant 9.99999993E-9 : f32
    %72 = vector.broadcast %cst_13 : f32 to vector<1x8xf32>
    %73 = arith.addf %63, %72 : vector<1x8xf32>
    %cst_14 = arith.constant 0.000000e+00 : f32
    %74 = vector.broadcast %cst_14 : f32 to vector<1x8xf32>
    %75 = arith.divf %74, %73 : vector<1x8xf32>
    %76 = math.sqrt %75 : vector<1x8xf32>
    %cst_15 = arith.constant 1.000000e+00 : f32
    %77 = vector.broadcast %cst_15 : f32 to vector<1x8xf32>
    %78 = arith.select %71, %77, %76 : vector<1x8xi1>, vector<1x8xf32>
    %79 = arith.addf %62, %78 : vector<1x8xf32>
    %cst_16 = arith.constant dense<0xFF800000> : vector<1xf32>
    %80 = vector.multi_reduction <maximumf>, %79, %cst_16 [1] : vector<1x8xf32> to vector<1xf32>
    %81 = vector.shape_cast %80 : vector<1xf32> to vector<1x1xf32>
    %82 = vector.broadcast %81 : vector<1x1xf32> to vector<1x8xf32>
    %83 = arith.cmpf oge, %79, %82 : vector<1x8xf32>
    %cst_17 = arith.constant 8.000000e+00 : f32
    %84 = vector.broadcast %cst_17 : f32 to vector<1x8xf32>
    %85 = arith.select %83, %2, %84 : vector<1x8xi1>, vector<1x8xf32>
    %cst_18 = arith.constant dense<0x7F800000> : vector<1xf32>
    %86 = vector.multi_reduction <minimumf>, %85, %cst_18 [1] : vector<1x8xf32> to vector<1xf32>
    %87 = vector.shape_cast %86 : vector<1xf32> to vector<1x1xf32>
    %88 = vector.broadcast %87 : vector<1x1xf32> to vector<1x8xf32>
    %89 = arith.cmpf oeq, %2, %88 : vector<1x8xf32>
    %cst_19 = arith.constant 0.000000e+00 : f32
    %90 = vector.broadcast %cst_19 : f32 to vector<1x8xf32>
    %91 = arith.select %89, %0, %90 : vector<1x8xi1>, vector<1x8xf32>
    %cst_20 = arith.constant dense<0.000000e+00> : vector<1xf32>
    %92 = vector.multi_reduction <add>, %91, %cst_20 [1] : vector<1x8xf32> to vector<1xf32>
    %93 = vector.shape_cast %92 : vector<1xf32> to vector<1x1xf32>
    %c0_21 = arith.constant 0 : index
    %94 = memref.load %arg2[%c0_21] : memref<8xf32, #tpu.memory_space<smem>>
    %95 = vector.broadcast %94 : f32 to vector<1x1xf32>
    %96 = arith.cmpf olt, %95, %93 : vector<1x1xf32>
    %97 = arith.extui %96 : vector<1x1xi1> to vector<1x1xi32>
    %98 = arith.sitofp %97 : vector<1x1xi32> to vector<1x1xf32>
    %99 = arith.addf %64, %98 : vector<1x1xf32>
    %cst_22 = arith.constant 0.000000e+00 : f32
    %100 = vector.broadcast %cst_22 : f32 to vector<1x8xf32>
    %101 = arith.select %89, %63, %100 : vector<1x8xi1>, vector<1x8xf32>
    %cst_23 = arith.constant dense<0.000000e+00> : vector<1xf32>
    %102 = vector.multi_reduction <add>, %101, %cst_23 [1] : vector<1x8xf32> to vector<1xf32>
    %103 = vector.shape_cast %102 : vector<1xf32> to vector<1x1xf32>
    %cst_24 = arith.constant 0.000000e+00 : f32
    %104 = vector.broadcast %cst_24 : f32 to vector<1x8xf32>
    %105 = arith.select %89, %62, %104 : vector<1x8xi1>, vector<1x8xf32>
    %cst_25 = arith.constant dense<0.000000e+00> : vector<1xf32>
    %106 = vector.multi_reduction <add>, %105, %cst_25 [1] : vector<1x8xf32> to vector<1xf32>
    %107 = vector.shape_cast %106 : vector<1xf32> to vector<1x1xf32>
    %108 = arith.mulf %103, %107 : vector<1x1xf32>
    %109 = arith.addf %108, %98 : vector<1x1xf32>
    %cst_26 = arith.constant 1.000000e+00 : f32
    %110 = vector.broadcast %cst_26 : f32 to vector<1x1xf32>
    %111 = arith.addf %103, %110 : vector<1x1xf32>
    %112 = arith.divf %109, %111 : vector<1x1xf32>
    %113 = vector.shape_cast %112 : vector<1x1xf32> to vector<1x1xf32>
    %114 = vector.broadcast %113 : vector<1x1xf32> to vector<1x8xf32>
    %115 = arith.select %89, %114, %62 : vector<1x8xi1>, vector<1x8xf32>
    %cst_27 = arith.constant 1.000000e+00 : f32
    %116 = vector.broadcast %cst_27 : f32 to vector<1x1xf32>
    %117 = arith.addf %103, %116 : vector<1x1xf32>
    %118 = vector.shape_cast %117 : vector<1x1xf32> to vector<1x1xf32>
    %119 = vector.broadcast %118 : vector<1x1xf32> to vector<1x8xf32>
    %120 = arith.select %89, %119, %63 : vector<1x8xi1>, vector<1x8xf32>
    %c0_28 = arith.constant 0 : index
    %c0_29 = arith.constant 0 : index
    %121 = vector.load %arg1[%c0_28, %c0_29] : memref<4x6xf32, #tpu.memory_space<vmem>>, vector<1x6xf32>
    %122 = vector.shape_cast %121 : vector<1x6xf32> to vector<1x6xf32>
    %123 = vector.broadcast %122 : vector<1x6xf32> to vector<6x6xf32>
    %cst_30 = arith.constant 0.000000e+00 : f32
    %124 = vector.broadcast %cst_30 : f32 to vector<6x6xf32>
    %125 = arith.select %41, %123, %124 : vector<6x6xi1>, vector<6x6xf32>
    %cst_31 = arith.constant dense<0.000000e+00> : vector<6xf32>
    %126 = vector.multi_reduction <add>, %125, %cst_31 [1] : vector<6x6xf32> to vector<6xf32>
    %127 = vector.shape_cast %126 : vector<6xf32> to vector<6x1xf32>
    %128 = vector.shape_cast %127 : vector<6x1xf32> to vector<6x1xf32>
    %129 = vector.broadcast %128 : vector<6x1xf32> to vector<6x36xf32>
    %cst_32 = arith.constant 0.000000e+00 : f32
    %130 = vector.broadcast %cst_32 : f32 to vector<6x36xf32>
    %131 = arith.select %38, %129, %130 : vector<6x36xi1>, vector<6x36xf32>
    %cst_33 = arith.constant dense<0.000000e+00> : vector<36xf32>
    %132 = vector.multi_reduction <add>, %131, %cst_33 [0] : vector<6x36xf32> to vector<36xf32>
    %133 = vector.shape_cast %132 : vector<36xf32> to vector<1x36xf32>
    %134 = vector.shape_cast %127 : vector<6x1xf32> to vector<6x1xf32>
    %135 = vector.broadcast %134 : vector<6x1xf32> to vector<6x36xf32>
    %cst_34 = arith.constant 0.000000e+00 : f32
    %136 = vector.broadcast %cst_34 : f32 to vector<6x36xf32>
    %137 = arith.select %15, %135, %136 : vector<6x36xi1>, vector<6x36xf32>
    %cst_35 = arith.constant dense<0.000000e+00> : vector<36xf32>
    %138 = vector.multi_reduction <add>, %137, %cst_35 [0] : vector<6x36xf32> to vector<36xf32>
    %139 = vector.shape_cast %138 : vector<36xf32> to vector<1x36xf32>
    %140 = arith.mulf %139, %133 : vector<1x36xf32>
    %141 = vector.broadcast %121 : vector<1x6xf32> to vector<8x6xf32>
    %142 = arith.mulf %68, %141 : vector<8x6xf32>
    %cst_36 = arith.constant dense<0.000000e+00> : vector<8xf32>
    %143 = vector.multi_reduction <add>, %142, %cst_36 [1] : vector<8x6xf32> to vector<8xf32>
    %144 = vector.shape_cast %143 : vector<8xf32> to vector<8x1xf32>
    %145 = vector.broadcast %140 : vector<1x36xf32> to vector<8x36xf32>
    %146 = arith.mulf %61, %145 : vector<8x36xf32>
    %cst_37 = arith.constant dense<0.000000e+00> : vector<8xf32>
    %147 = vector.multi_reduction <add>, %146, %cst_37 [1] : vector<8x36xf32> to vector<8xf32>
    %148 = vector.shape_cast %147 : vector<8xf32> to vector<8x1xf32>
    %cst_38 = arith.constant 0.000000e+00 : f32
    %149 = vector.broadcast %cst_38 : f32 to vector<8x1xf32>
    %150 = arith.maximumf %148, %149 : vector<8x1xf32>
    %151 = math.sqrt %150 : vector<8x1xf32>
    %cst_39 = arith.constant 2.500000e-01 : f32
    %152 = vector.broadcast %cst_39 : f32 to vector<8x1xf32>
    %153 = arith.mulf %152, %151 : vector<8x1xf32>
    %154 = arith.addf %144, %153 : vector<8x1xf32>
    %cst_40 = arith.constant dense<0xFF800000> : vector<1xf32>
    %155 = vector.multi_reduction <maximumf>, %154, %cst_40 [0] : vector<8x1xf32> to vector<1xf32>
    %156 = vector.shape_cast %155 : vector<1xf32> to vector<1x1xf32>
    %157 = vector.broadcast %156 : vector<1x1xf32> to vector<8x1xf32>
    %158 = arith.cmpf oge, %154, %157 : vector<8x1xf32>
    %cst_41 = arith.constant 8.000000e+00 : f32
    %159 = vector.broadcast %cst_41 : f32 to vector<8x1xf32>
    %160 = arith.select %158, %4, %159 : vector<8x1xi1>, vector<8x1xf32>
    %cst_42 = arith.constant dense<0x7F800000> : vector<1xf32>
    %161 = vector.multi_reduction <minimumf>, %160, %cst_42 [0] : vector<8x1xf32> to vector<1xf32>
    %162 = vector.shape_cast %161 : vector<1xf32> to vector<1x1xf32>
    %163 = vector.broadcast %162 : vector<1x1xf32> to vector<1x8xf32>
    %164 = arith.cmpf oeq, %2, %163 : vector<1x8xf32>
    %165 = vector.broadcast %162 : vector<1x1xf32> to vector<8x1xf32>
    %166 = arith.cmpf oeq, %4, %165 : vector<8x1xf32>
    %cst_43 = arith.constant 0.000000e+00 : f32
    %167 = vector.broadcast %cst_43 : f32 to vector<1x8xf32>
    %168 = arith.select %164, %0, %167 : vector<1x8xi1>, vector<1x8xf32>
    %cst_44 = arith.constant dense<0.000000e+00> : vector<1xf32>
    %169 = vector.multi_reduction <add>, %168, %cst_44 [1] : vector<1x8xf32> to vector<1xf32>
    %170 = vector.shape_cast %169 : vector<1xf32> to vector<1x1xf32>
    %c4 = arith.constant 4 : index
    %171 = memref.load %arg2[%c4] : memref<8xf32, #tpu.memory_space<smem>>
    %172 = vector.broadcast %171 : f32 to vector<1x1xf32>
    %173 = arith.cmpf olt, %172, %170 : vector<1x1xf32>
    %174 = arith.extui %173 : vector<1x1xi1> to vector<1x1xi32>
    %175 = arith.sitofp %174 : vector<1x1xi32> to vector<1x1xf32>
    %cst_45 = arith.constant 1.000000e+00 : f32
    %176 = vector.broadcast %cst_45 : f32 to vector<1x1xf32>
    %177 = arith.cmpf oeq, %175, %176 : vector<1x1xf32>
    %cst_46 = arith.constant 6.000000e-01 : f32
    %cst_47 = arith.constant -1.600000e+01 : f32
    %178 = vector.broadcast %cst_46 : f32 to vector<1x1xf32>
    %179 = vector.broadcast %cst_47 : f32 to vector<1x1xf32>
    %180 = arith.select %177, %178, %179 : vector<1x1xi1>, vector<1x1xf32>
    %cst_48 = arith.constant 0.000000e+00 : f32
    %181 = vector.shape_cast %166 : vector<8x1xi1> to vector<8x1xi1>
    %182 = vector.broadcast %181 : vector<8x1xi1> to vector<8x36xi1>
    %183 = vector.broadcast %cst_48 : f32 to vector<8x36xf32>
    %184 = arith.select %182, %61, %183 : vector<8x36xi1>, vector<8x36xf32>
    %cst_49 = arith.constant dense<0.000000e+00> : vector<36xf32>
    %185 = vector.multi_reduction <add>, %184, %cst_49 [0] : vector<8x36xf32> to vector<36xf32>
    %186 = vector.shape_cast %185 : vector<36xf32> to vector<1x36xf32>
    %cst_50 = arith.constant 0.000000e+00 : f32
    %187 = vector.shape_cast %166 : vector<8x1xi1> to vector<8x1xi1>
    %188 = vector.broadcast %187 : vector<8x1xi1> to vector<8x6xi1>
    %189 = vector.broadcast %cst_50 : f32 to vector<8x6xf32>
    %190 = arith.select %188, %69, %189 : vector<8x6xi1>, vector<8x6xf32>
    %cst_51 = arith.constant dense<0.000000e+00> : vector<6xf32>
    %191 = vector.multi_reduction <add>, %190, %cst_51 [0] : vector<8x6xf32> to vector<6xf32>
    %192 = vector.shape_cast %191 : vector<6xf32> to vector<1x6xf32>
    %cst_52 = arith.constant 0.000000e+00 : f32
    %193 = vector.broadcast %cst_52 : f32 to vector<8x1xf32>
    %194 = arith.select %166, %150, %193 : vector<8x1xi1>, vector<8x1xf32>
    %cst_53 = arith.constant dense<0.000000e+00> : vector<1xf32>
    %195 = vector.multi_reduction <add>, %194, %cst_53 [0] : vector<8x1xf32> to vector<1xf32>
    %196 = vector.shape_cast %195 : vector<1xf32> to vector<1x1xf32>
    %197 = vector.broadcast %180 : vector<1x1xf32> to vector<1x6xf32>
    %198 = arith.mulf %197, %121 : vector<1x6xf32>
    %199 = arith.addf %192, %198 : vector<1x6xf32>
    %200 = arith.mulf %186, %133 : vector<1x36xf32>
    %201 = vector.shape_cast %200 : vector<1x36xf32> to vector<1x36xf32>
    %202 = vector.broadcast %201 : vector<1x36xf32> to vector<6x36xf32>
    %cst_54 = arith.constant 0.000000e+00 : f32
    %203 = vector.broadcast %cst_54 : f32 to vector<6x36xf32>
    %204 = arith.select %15, %202, %203 : vector<6x36xi1>, vector<6x36xf32>
    %cst_55 = arith.constant dense<0.000000e+00> : vector<6xf32>
    %205 = vector.multi_reduction <add>, %204, %cst_55 [1] : vector<6x36xf32> to vector<6xf32>
    %206 = vector.shape_cast %205 : vector<6xf32> to vector<6x1xf32>
    %207 = vector.shape_cast %206 : vector<6x1xf32> to vector<6x1xf32>
    %208 = vector.broadcast %207 : vector<6x1xf32> to vector<6x36xf32>
    %cst_56 = arith.constant 0.000000e+00 : f32
    %209 = vector.broadcast %cst_56 : f32 to vector<6x36xf32>
    %210 = arith.select %15, %208, %209 : vector<6x36xi1>, vector<6x36xf32>
    %cst_57 = arith.constant dense<0.000000e+00> : vector<36xf32>
    %211 = vector.multi_reduction <add>, %210, %cst_57 [0] : vector<6x36xf32> to vector<36xf32>
    %212 = vector.shape_cast %211 : vector<36xf32> to vector<1x36xf32>
    %213 = vector.shape_cast %206 : vector<6x1xf32> to vector<6x1xf32>
    %214 = vector.broadcast %213 : vector<6x1xf32> to vector<6x36xf32>
    %cst_58 = arith.constant 0.000000e+00 : f32
    %215 = vector.broadcast %cst_58 : f32 to vector<6x36xf32>
    %216 = arith.select %38, %214, %215 : vector<6x36xi1>, vector<6x36xf32>
    %cst_59 = arith.constant dense<0.000000e+00> : vector<36xf32>
    %217 = vector.multi_reduction <add>, %216, %cst_59 [0] : vector<6x36xf32> to vector<36xf32>
    %218 = vector.shape_cast %217 : vector<36xf32> to vector<1x36xf32>
    %219 = arith.mulf %212, %218 : vector<1x36xf32>
    %cst_60 = arith.constant 1.000000e+00 : f32
    %220 = vector.broadcast %cst_60 : f32 to vector<1x1xf32>
    %221 = arith.addf %220, %196 : vector<1x1xf32>
    %222 = vector.broadcast %221 : vector<1x1xf32> to vector<1x36xf32>
    %223 = arith.divf %219, %222 : vector<1x36xf32>
    %224 = arith.subf %186, %223 : vector<1x36xf32>
    %225 = vector.shape_cast %199 : vector<1x6xf32> to vector<1x6xf32>
    %226 = vector.broadcast %225 : vector<1x6xf32> to vector<6x6xf32>
    %cst_61 = arith.constant 0.000000e+00 : f32
    %227 = vector.broadcast %cst_61 : f32 to vector<6x6xf32>
    %228 = arith.select %41, %226, %227 : vector<6x6xi1>, vector<6x6xf32>
    %cst_62 = arith.constant dense<0.000000e+00> : vector<6xf32>
    %229 = vector.multi_reduction <add>, %228, %cst_62 [1] : vector<6x6xf32> to vector<6xf32>
    %230 = vector.shape_cast %229 : vector<6xf32> to vector<6x1xf32>
    %231 = vector.shape_cast %230 : vector<6x1xf32> to vector<6x1xf32>
    %232 = vector.broadcast %231 : vector<6x1xf32> to vector<6x36xf32>
    %cst_63 = arith.constant 0.000000e+00 : f32
    %233 = vector.broadcast %cst_63 : f32 to vector<6x36xf32>
    %234 = arith.select %38, %232, %233 : vector<6x36xi1>, vector<6x36xf32>
    %cst_64 = arith.constant dense<0.000000e+00> : vector<36xf32>
    %235 = vector.multi_reduction <add>, %234, %cst_64 [0] : vector<6x36xf32> to vector<36xf32>
    %236 = vector.shape_cast %235 : vector<36xf32> to vector<1x36xf32>
    %237 = arith.mulf %224, %236 : vector<1x36xf32>
    %238 = vector.shape_cast %237 : vector<1x36xf32> to vector<1x36xf32>
    %239 = vector.broadcast %238 : vector<1x36xf32> to vector<6x36xf32>
    %cst_65 = arith.constant 0.000000e+00 : f32
    %240 = vector.broadcast %cst_65 : f32 to vector<6x36xf32>
    %241 = arith.select %15, %239, %240 : vector<6x36xi1>, vector<6x36xf32>
    %cst_66 = arith.constant dense<0.000000e+00> : vector<6xf32>
    %242 = vector.multi_reduction <add>, %241, %cst_66 [1] : vector<6x36xf32> to vector<6xf32>
    %243 = vector.shape_cast %242 : vector<6xf32> to vector<6x1xf32>
    %244 = vector.shape_cast %243 : vector<6x1xf32> to vector<6x1xf32>
    %245 = vector.broadcast %244 : vector<6x1xf32> to vector<6x6xf32>
    %cst_67 = arith.constant 0.000000e+00 : f32
    %246 = vector.broadcast %cst_67 : f32 to vector<6x6xf32>
    %247 = arith.select %41, %245, %246 : vector<6x6xi1>, vector<6x6xf32>
    %cst_68 = arith.constant dense<0.000000e+00> : vector<6xf32>
    %248 = vector.multi_reduction <add>, %247, %cst_68 [0] : vector<6x6xf32> to vector<6xf32>
    %249 = vector.shape_cast %248 : vector<6xf32> to vector<1x6xf32>
    %250 = vector.broadcast %140 : vector<1x36xf32> to vector<8x36xf32>
    %251 = arith.addf %61, %250 : vector<8x36xf32>
    %252 = vector.shape_cast %166 : vector<8x1xi1> to vector<8x1xi1>
    %253 = vector.broadcast %252 : vector<8x1xi1> to vector<8x36xi1>
    %254 = arith.select %253, %251, %61 : vector<8x36xi1>, vector<8x36xf32>
    %255 = vector.shape_cast %166 : vector<8x1xi1> to vector<8x1xi1>
    %256 = vector.broadcast %255 : vector<8x1xi1> to vector<8x36xi1>
    %257 = vector.shape_cast %224 : vector<1x36xf32> to vector<1x36xf32>
    %258 = vector.broadcast %257 : vector<1x36xf32> to vector<8x36xf32>
    %259 = arith.select %256, %258, %61 : vector<8x36xi1>, vector<8x36xf32>
    %260 = vector.shape_cast %166 : vector<8x1xi1> to vector<8x1xi1>
    %261 = vector.broadcast %260 : vector<8x1xi1> to vector<8x6xi1>
    %262 = vector.shape_cast %199 : vector<1x6xf32> to vector<1x6xf32>
    %263 = vector.broadcast %262 : vector<1x6xf32> to vector<8x6xf32>
    %264 = arith.select %261, %263, %69 : vector<8x6xi1>, vector<8x6xf32>
    %265 = vector.shape_cast %166 : vector<8x1xi1> to vector<8x1xi1>
    %266 = vector.broadcast %265 : vector<8x1xi1> to vector<8x6xi1>
    %267 = vector.shape_cast %249 : vector<1x6xf32> to vector<1x6xf32>
    %268 = vector.broadcast %267 : vector<1x6xf32> to vector<8x6xf32>
    %269 = arith.select %266, %268, %68 : vector<8x6xi1>, vector<8x6xf32>
    %270 = arith.addf %67, %175 : vector<1x1xf32>
    %cst_69 = arith.constant 0.000000e+00 : f32
    %271 = vector.broadcast %cst_69 : f32 to vector<1x8xf32>
    %272 = arith.select %164, %66, %271 : vector<1x8xi1>, vector<1x8xf32>
    %cst_70 = arith.constant dense<0.000000e+00> : vector<1xf32>
    %273 = vector.multi_reduction <add>, %272, %cst_70 [1] : vector<1x8xf32> to vector<1xf32>
    %274 = vector.shape_cast %273 : vector<1xf32> to vector<1x1xf32>
    %cst_71 = arith.constant 0.000000e+00 : f32
    %275 = vector.broadcast %cst_71 : f32 to vector<1x8xf32>
    %276 = arith.select %164, %65, %275 : vector<1x8xi1>, vector<1x8xf32>
    %cst_72 = arith.constant dense<0.000000e+00> : vector<1xf32>
    %277 = vector.multi_reduction <add>, %276, %cst_72 [1] : vector<1x8xf32> to vector<1xf32>
    %278 = vector.shape_cast %277 : vector<1xf32> to vector<1x1xf32>
    %279 = arith.mulf %274, %278 : vector<1x1xf32>
    %280 = arith.addf %279, %175 : vector<1x1xf32>
    %cst_73 = arith.constant 1.000000e+00 : f32
    %281 = vector.broadcast %cst_73 : f32 to vector<1x1xf32>
    %282 = arith.addf %274, %281 : vector<1x1xf32>
    %283 = arith.divf %280, %282 : vector<1x1xf32>
    %284 = vector.shape_cast %283 : vector<1x1xf32> to vector<1x1xf32>
    %285 = vector.broadcast %284 : vector<1x1xf32> to vector<1x8xf32>
    %286 = arith.select %164, %285, %65 : vector<1x8xi1>, vector<1x8xf32>
    %cst_74 = arith.constant 1.000000e+00 : f32
    %287 = vector.broadcast %cst_74 : f32 to vector<1x1xf32>
    %288 = arith.addf %274, %287 : vector<1x1xf32>
    %289 = vector.shape_cast %288 : vector<1x1xf32> to vector<1x1xf32>
    %290 = vector.broadcast %289 : vector<1x1xf32> to vector<1x8xf32>
    %291 = arith.select %164, %290, %66 : vector<1x8xi1>, vector<1x8xf32>
    %cst_75 = arith.constant 0.000000e+00 : f32
    %292 = vector.broadcast %cst_75 : f32 to vector<1x8xf32>
    %293 = arith.cmpf oeq, %120, %292 : vector<1x8xf32>
    %cst_76 = arith.constant 9.99999993E-9 : f32
    %294 = vector.broadcast %cst_76 : f32 to vector<1x8xf32>
    %295 = arith.addf %120, %294 : vector<1x8xf32>
    %cst_77 = arith.constant 6.020600e-01 : f32
    %296 = vector.broadcast %cst_77 : f32 to vector<1x8xf32>
    %297 = arith.divf %296, %295 : vector<1x8xf32>
    %298 = math.sqrt %297 : vector<1x8xf32>
    %cst_78 = arith.constant 1.000000e+00 : f32
    %299 = vector.broadcast %cst_78 : f32 to vector<1x8xf32>
    %300 = arith.select %293, %299, %298 : vector<1x8xi1>, vector<1x8xf32>
    %301 = arith.addf %115, %300 : vector<1x8xf32>
    %cst_79 = arith.constant dense<0xFF800000> : vector<1xf32>
    %302 = vector.multi_reduction <maximumf>, %301, %cst_79 [1] : vector<1x8xf32> to vector<1xf32>
    %303 = vector.shape_cast %302 : vector<1xf32> to vector<1x1xf32>
    %304 = vector.broadcast %303 : vector<1x1xf32> to vector<1x8xf32>
    %305 = arith.cmpf oge, %301, %304 : vector<1x8xf32>
    %cst_80 = arith.constant 8.000000e+00 : f32
    %306 = vector.broadcast %cst_80 : f32 to vector<1x8xf32>
    %307 = arith.select %305, %2, %306 : vector<1x8xi1>, vector<1x8xf32>
    %cst_81 = arith.constant dense<0x7F800000> : vector<1xf32>
    %308 = vector.multi_reduction <minimumf>, %307, %cst_81 [1] : vector<1x8xf32> to vector<1xf32>
    %309 = vector.shape_cast %308 : vector<1xf32> to vector<1x1xf32>
    %310 = vector.broadcast %309 : vector<1x1xf32> to vector<1x8xf32>
    %311 = arith.cmpf oeq, %2, %310 : vector<1x8xf32>
    %cst_82 = arith.constant 0.000000e+00 : f32
    %312 = vector.broadcast %cst_82 : f32 to vector<1x8xf32>
    %313 = arith.select %311, %0, %312 : vector<1x8xi1>, vector<1x8xf32>
    %cst_83 = arith.constant dense<0.000000e+00> : vector<1xf32>
    %314 = vector.multi_reduction <add>, %313, %cst_83 [1] : vector<1x8xf32> to vector<1xf32>
    %315 = vector.shape_cast %314 : vector<1xf32> to vector<1x1xf32>
    %c1 = arith.constant 1 : index
    %316 = memref.load %arg2[%c1] : memref<8xf32, #tpu.memory_space<smem>>
    %317 = vector.broadcast %316 : f32 to vector<1x1xf32>
    %318 = arith.cmpf olt, %317, %315 : vector<1x1xf32>
    %319 = arith.extui %318 : vector<1x1xi1> to vector<1x1xi32>
    %320 = arith.sitofp %319 : vector<1x1xi32> to vector<1x1xf32>
    %321 = arith.addf %99, %320 : vector<1x1xf32>
    %cst_84 = arith.constant 0.000000e+00 : f32
    %322 = vector.broadcast %cst_84 : f32 to vector<1x8xf32>
    %323 = arith.select %311, %120, %322 : vector<1x8xi1>, vector<1x8xf32>
    %cst_85 = arith.constant dense<0.000000e+00> : vector<1xf32>
    %324 = vector.multi_reduction <add>, %323, %cst_85 [1] : vector<1x8xf32> to vector<1xf32>
    %325 = vector.shape_cast %324 : vector<1xf32> to vector<1x1xf32>
    %cst_86 = arith.constant 0.000000e+00 : f32
    %326 = vector.broadcast %cst_86 : f32 to vector<1x8xf32>
    %327 = arith.select %311, %115, %326 : vector<1x8xi1>, vector<1x8xf32>
    %cst_87 = arith.constant dense<0.000000e+00> : vector<1xf32>
    %328 = vector.multi_reduction <add>, %327, %cst_87 [1] : vector<1x8xf32> to vector<1xf32>
    %329 = vector.shape_cast %328 : vector<1xf32> to vector<1x1xf32>
    %330 = arith.mulf %325, %329 : vector<1x1xf32>
    %331 = arith.addf %330, %320 : vector<1x1xf32>
    %cst_88 = arith.constant 1.000000e+00 : f32
    %332 = vector.broadcast %cst_88 : f32 to vector<1x1xf32>
    %333 = arith.addf %325, %332 : vector<1x1xf32>
    %334 = arith.divf %331, %333 : vector<1x1xf32>
    %335 = vector.shape_cast %334 : vector<1x1xf32> to vector<1x1xf32>
    %336 = vector.broadcast %335 : vector<1x1xf32> to vector<1x8xf32>
    %337 = arith.select %311, %336, %115 : vector<1x8xi1>, vector<1x8xf32>
    %cst_89 = arith.constant 1.000000e+00 : f32
    %338 = vector.broadcast %cst_89 : f32 to vector<1x1xf32>
    %339 = arith.addf %325, %338 : vector<1x1xf32>
    %340 = vector.shape_cast %339 : vector<1x1xf32> to vector<1x1xf32>
    %341 = vector.broadcast %340 : vector<1x1xf32> to vector<1x8xf32>
    %342 = arith.select %311, %341, %120 : vector<1x8xi1>, vector<1x8xf32>
    %c1_90 = arith.constant 1 : index
    %c0_91 = arith.constant 0 : index
    %343 = vector.load %arg1[%c1_90, %c0_91] : memref<4x6xf32, #tpu.memory_space<vmem>>, vector<1x6xf32>
    %344 = vector.shape_cast %343 : vector<1x6xf32> to vector<1x6xf32>
    %345 = vector.broadcast %344 : vector<1x6xf32> to vector<6x6xf32>
    %cst_92 = arith.constant 0.000000e+00 : f32
    %346 = vector.broadcast %cst_92 : f32 to vector<6x6xf32>
    %347 = arith.select %41, %345, %346 : vector<6x6xi1>, vector<6x6xf32>
    %cst_93 = arith.constant dense<0.000000e+00> : vector<6xf32>
    %348 = vector.multi_reduction <add>, %347, %cst_93 [1] : vector<6x6xf32> to vector<6xf32>
    %349 = vector.shape_cast %348 : vector<6xf32> to vector<6x1xf32>
    %350 = vector.shape_cast %349 : vector<6x1xf32> to vector<6x1xf32>
    %351 = vector.broadcast %350 : vector<6x1xf32> to vector<6x36xf32>
    %cst_94 = arith.constant 0.000000e+00 : f32
    %352 = vector.broadcast %cst_94 : f32 to vector<6x36xf32>
    %353 = arith.select %38, %351, %352 : vector<6x36xi1>, vector<6x36xf32>
    %cst_95 = arith.constant dense<0.000000e+00> : vector<36xf32>
    %354 = vector.multi_reduction <add>, %353, %cst_95 [0] : vector<6x36xf32> to vector<36xf32>
    %355 = vector.shape_cast %354 : vector<36xf32> to vector<1x36xf32>
    %356 = vector.shape_cast %349 : vector<6x1xf32> to vector<6x1xf32>
    %357 = vector.broadcast %356 : vector<6x1xf32> to vector<6x36xf32>
    %cst_96 = arith.constant 0.000000e+00 : f32
    %358 = vector.broadcast %cst_96 : f32 to vector<6x36xf32>
    %359 = arith.select %15, %357, %358 : vector<6x36xi1>, vector<6x36xf32>
    %cst_97 = arith.constant dense<0.000000e+00> : vector<36xf32>
    %360 = vector.multi_reduction <add>, %359, %cst_97 [0] : vector<6x36xf32> to vector<36xf32>
    %361 = vector.shape_cast %360 : vector<36xf32> to vector<1x36xf32>
    %362 = arith.mulf %361, %355 : vector<1x36xf32>
    %363 = vector.broadcast %343 : vector<1x6xf32> to vector<8x6xf32>
    %364 = arith.mulf %269, %363 : vector<8x6xf32>
    %cst_98 = arith.constant dense<0.000000e+00> : vector<8xf32>
    %365 = vector.multi_reduction <add>, %364, %cst_98 [1] : vector<8x6xf32> to vector<8xf32>
    %366 = vector.shape_cast %365 : vector<8xf32> to vector<8x1xf32>
    %367 = vector.broadcast %362 : vector<1x36xf32> to vector<8x36xf32>
    %368 = arith.mulf %259, %367 : vector<8x36xf32>
    %cst_99 = arith.constant dense<0.000000e+00> : vector<8xf32>
    %369 = vector.multi_reduction <add>, %368, %cst_99 [1] : vector<8x36xf32> to vector<8xf32>
    %370 = vector.shape_cast %369 : vector<8xf32> to vector<8x1xf32>
    %cst_100 = arith.constant 0.000000e+00 : f32
    %371 = vector.broadcast %cst_100 : f32 to vector<8x1xf32>
    %372 = arith.maximumf %370, %371 : vector<8x1xf32>
    %373 = math.sqrt %372 : vector<8x1xf32>
    %cst_101 = arith.constant 2.500000e-01 : f32
    %374 = vector.broadcast %cst_101 : f32 to vector<8x1xf32>
    %375 = arith.mulf %374, %373 : vector<8x1xf32>
    %376 = arith.addf %366, %375 : vector<8x1xf32>
    %cst_102 = arith.constant dense<0xFF800000> : vector<1xf32>
    %377 = vector.multi_reduction <maximumf>, %376, %cst_102 [0] : vector<8x1xf32> to vector<1xf32>
    %378 = vector.shape_cast %377 : vector<1xf32> to vector<1x1xf32>
    %379 = vector.broadcast %378 : vector<1x1xf32> to vector<8x1xf32>
    %380 = arith.cmpf oge, %376, %379 : vector<8x1xf32>
    %cst_103 = arith.constant 8.000000e+00 : f32
    %381 = vector.broadcast %cst_103 : f32 to vector<8x1xf32>
    %382 = arith.select %380, %4, %381 : vector<8x1xi1>, vector<8x1xf32>
    %cst_104 = arith.constant dense<0x7F800000> : vector<1xf32>
    %383 = vector.multi_reduction <minimumf>, %382, %cst_104 [0] : vector<8x1xf32> to vector<1xf32>
    %384 = vector.shape_cast %383 : vector<1xf32> to vector<1x1xf32>
    %385 = vector.broadcast %384 : vector<1x1xf32> to vector<1x8xf32>
    %386 = arith.cmpf oeq, %2, %385 : vector<1x8xf32>
    %387 = vector.broadcast %384 : vector<1x1xf32> to vector<8x1xf32>
    %388 = arith.cmpf oeq, %4, %387 : vector<8x1xf32>
    %cst_105 = arith.constant 0.000000e+00 : f32
    %389 = vector.broadcast %cst_105 : f32 to vector<1x8xf32>
    %390 = arith.select %386, %0, %389 : vector<1x8xi1>, vector<1x8xf32>
    %cst_106 = arith.constant dense<0.000000e+00> : vector<1xf32>
    %391 = vector.multi_reduction <add>, %390, %cst_106 [1] : vector<1x8xf32> to vector<1xf32>
    %392 = vector.shape_cast %391 : vector<1xf32> to vector<1x1xf32>
    %c5 = arith.constant 5 : index
    %393 = memref.load %arg2[%c5] : memref<8xf32, #tpu.memory_space<smem>>
    %394 = vector.broadcast %393 : f32 to vector<1x1xf32>
    %395 = arith.cmpf olt, %394, %392 : vector<1x1xf32>
    %396 = arith.extui %395 : vector<1x1xi1> to vector<1x1xi32>
    %397 = arith.sitofp %396 : vector<1x1xi32> to vector<1x1xf32>
    %cst_107 = arith.constant 1.000000e+00 : f32
    %398 = vector.broadcast %cst_107 : f32 to vector<1x1xf32>
    %399 = arith.cmpf oeq, %397, %398 : vector<1x1xf32>
    %cst_108 = arith.constant 6.000000e-01 : f32
    %cst_109 = arith.constant -1.600000e+01 : f32
    %400 = vector.broadcast %cst_108 : f32 to vector<1x1xf32>
    %401 = vector.broadcast %cst_109 : f32 to vector<1x1xf32>
    %402 = arith.select %399, %400, %401 : vector<1x1xi1>, vector<1x1xf32>
    %cst_110 = arith.constant 0.000000e+00 : f32
    %403 = vector.shape_cast %388 : vector<8x1xi1> to vector<8x1xi1>
    %404 = vector.broadcast %403 : vector<8x1xi1> to vector<8x36xi1>
    %405 = vector.broadcast %cst_110 : f32 to vector<8x36xf32>
    %406 = arith.select %404, %259, %405 : vector<8x36xi1>, vector<8x36xf32>
    %cst_111 = arith.constant dense<0.000000e+00> : vector<36xf32>
    %407 = vector.multi_reduction <add>, %406, %cst_111 [0] : vector<8x36xf32> to vector<36xf32>
    %408 = vector.shape_cast %407 : vector<36xf32> to vector<1x36xf32>
    %cst_112 = arith.constant 0.000000e+00 : f32
    %409 = vector.shape_cast %388 : vector<8x1xi1> to vector<8x1xi1>
    %410 = vector.broadcast %409 : vector<8x1xi1> to vector<8x6xi1>
    %411 = vector.broadcast %cst_112 : f32 to vector<8x6xf32>
    %412 = arith.select %410, %264, %411 : vector<8x6xi1>, vector<8x6xf32>
    %cst_113 = arith.constant dense<0.000000e+00> : vector<6xf32>
    %413 = vector.multi_reduction <add>, %412, %cst_113 [0] : vector<8x6xf32> to vector<6xf32>
    %414 = vector.shape_cast %413 : vector<6xf32> to vector<1x6xf32>
    %cst_114 = arith.constant 0.000000e+00 : f32
    %415 = vector.broadcast %cst_114 : f32 to vector<8x1xf32>
    %416 = arith.select %388, %372, %415 : vector<8x1xi1>, vector<8x1xf32>
    %cst_115 = arith.constant dense<0.000000e+00> : vector<1xf32>
    %417 = vector.multi_reduction <add>, %416, %cst_115 [0] : vector<8x1xf32> to vector<1xf32>
    %418 = vector.shape_cast %417 : vector<1xf32> to vector<1x1xf32>
    %419 = vector.broadcast %402 : vector<1x1xf32> to vector<1x6xf32>
    %420 = arith.mulf %419, %343 : vector<1x6xf32>
    %421 = arith.addf %414, %420 : vector<1x6xf32>
    %422 = arith.mulf %408, %355 : vector<1x36xf32>
    %423 = vector.shape_cast %422 : vector<1x36xf32> to vector<1x36xf32>
    %424 = vector.broadcast %423 : vector<1x36xf32> to vector<6x36xf32>
    %cst_116 = arith.constant 0.000000e+00 : f32
    %425 = vector.broadcast %cst_116 : f32 to vector<6x36xf32>
    %426 = arith.select %15, %424, %425 : vector<6x36xi1>, vector<6x36xf32>
    %cst_117 = arith.constant dense<0.000000e+00> : vector<6xf32>
    %427 = vector.multi_reduction <add>, %426, %cst_117 [1] : vector<6x36xf32> to vector<6xf32>
    %428 = vector.shape_cast %427 : vector<6xf32> to vector<6x1xf32>
    %429 = vector.shape_cast %428 : vector<6x1xf32> to vector<6x1xf32>
    %430 = vector.broadcast %429 : vector<6x1xf32> to vector<6x36xf32>
    %cst_118 = arith.constant 0.000000e+00 : f32
    %431 = vector.broadcast %cst_118 : f32 to vector<6x36xf32>
    %432 = arith.select %15, %430, %431 : vector<6x36xi1>, vector<6x36xf32>
    %cst_119 = arith.constant dense<0.000000e+00> : vector<36xf32>
    %433 = vector.multi_reduction <add>, %432, %cst_119 [0] : vector<6x36xf32> to vector<36xf32>
    %434 = vector.shape_cast %433 : vector<36xf32> to vector<1x36xf32>
    %435 = vector.shape_cast %428 : vector<6x1xf32> to vector<6x1xf32>
    %436 = vector.broadcast %435 : vector<6x1xf32> to vector<6x36xf32>
    %cst_120 = arith.constant 0.000000e+00 : f32
    %437 = vector.broadcast %cst_120 : f32 to vector<6x36xf32>
    %438 = arith.select %38, %436, %437 : vector<6x36xi1>, vector<6x36xf32>
    %cst_121 = arith.constant dense<0.000000e+00> : vector<36xf32>
    %439 = vector.multi_reduction <add>, %438, %cst_121 [0] : vector<6x36xf32> to vector<36xf32>
    %440 = vector.shape_cast %439 : vector<36xf32> to vector<1x36xf32>
    %441 = arith.mulf %434, %440 : vector<1x36xf32>
    %cst_122 = arith.constant 1.000000e+00 : f32
    %442 = vector.broadcast %cst_122 : f32 to vector<1x1xf32>
    %443 = arith.addf %442, %418 : vector<1x1xf32>
    %444 = vector.broadcast %443 : vector<1x1xf32> to vector<1x36xf32>
    %445 = arith.divf %441, %444 : vector<1x36xf32>
    %446 = arith.subf %408, %445 : vector<1x36xf32>
    %447 = vector.shape_cast %421 : vector<1x6xf32> to vector<1x6xf32>
    %448 = vector.broadcast %447 : vector<1x6xf32> to vector<6x6xf32>
    %cst_123 = arith.constant 0.000000e+00 : f32
    %449 = vector.broadcast %cst_123 : f32 to vector<6x6xf32>
    %450 = arith.select %41, %448, %449 : vector<6x6xi1>, vector<6x6xf32>
    %cst_124 = arith.constant dense<0.000000e+00> : vector<6xf32>
    %451 = vector.multi_reduction <add>, %450, %cst_124 [1] : vector<6x6xf32> to vector<6xf32>
    %452 = vector.shape_cast %451 : vector<6xf32> to vector<6x1xf32>
    %453 = vector.shape_cast %452 : vector<6x1xf32> to vector<6x1xf32>
    %454 = vector.broadcast %453 : vector<6x1xf32> to vector<6x36xf32>
    %cst_125 = arith.constant 0.000000e+00 : f32
    %455 = vector.broadcast %cst_125 : f32 to vector<6x36xf32>
    %456 = arith.select %38, %454, %455 : vector<6x36xi1>, vector<6x36xf32>
    %cst_126 = arith.constant dense<0.000000e+00> : vector<36xf32>
    %457 = vector.multi_reduction <add>, %456, %cst_126 [0] : vector<6x36xf32> to vector<36xf32>
    %458 = vector.shape_cast %457 : vector<36xf32> to vector<1x36xf32>
    %459 = arith.mulf %446, %458 : vector<1x36xf32>
    %460 = vector.shape_cast %459 : vector<1x36xf32> to vector<1x36xf32>
    %461 = vector.broadcast %460 : vector<1x36xf32> to vector<6x36xf32>
    %cst_127 = arith.constant 0.000000e+00 : f32
    %462 = vector.broadcast %cst_127 : f32 to vector<6x36xf32>
    %463 = arith.select %15, %461, %462 : vector<6x36xi1>, vector<6x36xf32>
    %cst_128 = arith.constant dense<0.000000e+00> : vector<6xf32>
    %464 = vector.multi_reduction <add>, %463, %cst_128 [1] : vector<6x36xf32> to vector<6xf32>
    %465 = vector.shape_cast %464 : vector<6xf32> to vector<6x1xf32>
    %466 = vector.shape_cast %465 : vector<6x1xf32> to vector<6x1xf32>
    %467 = vector.broadcast %466 : vector<6x1xf32> to vector<6x6xf32>
    %cst_129 = arith.constant 0.000000e+00 : f32
    %468 = vector.broadcast %cst_129 : f32 to vector<6x6xf32>
    %469 = arith.select %41, %467, %468 : vector<6x6xi1>, vector<6x6xf32>
    %cst_130 = arith.constant dense<0.000000e+00> : vector<6xf32>
    %470 = vector.multi_reduction <add>, %469, %cst_130 [0] : vector<6x6xf32> to vector<6xf32>
    %471 = vector.shape_cast %470 : vector<6xf32> to vector<1x6xf32>
    %472 = vector.broadcast %362 : vector<1x36xf32> to vector<8x36xf32>
    %473 = arith.addf %254, %472 : vector<8x36xf32>
    %474 = vector.shape_cast %388 : vector<8x1xi1> to vector<8x1xi1>
    %475 = vector.broadcast %474 : vector<8x1xi1> to vector<8x36xi1>
    %476 = arith.select %475, %473, %254 : vector<8x36xi1>, vector<8x36xf32>
    %477 = vector.shape_cast %388 : vector<8x1xi1> to vector<8x1xi1>
    %478 = vector.broadcast %477 : vector<8x1xi1> to vector<8x36xi1>
    %479 = vector.shape_cast %446 : vector<1x36xf32> to vector<1x36xf32>
    %480 = vector.broadcast %479 : vector<1x36xf32> to vector<8x36xf32>
    %481 = arith.select %478, %480, %259 : vector<8x36xi1>, vector<8x36xf32>
    %482 = vector.shape_cast %388 : vector<8x1xi1> to vector<8x1xi1>
    %483 = vector.broadcast %482 : vector<8x1xi1> to vector<8x6xi1>
    %484 = vector.shape_cast %421 : vector<1x6xf32> to vector<1x6xf32>
    %485 = vector.broadcast %484 : vector<1x6xf32> to vector<8x6xf32>
    %486 = arith.select %483, %485, %264 : vector<8x6xi1>, vector<8x6xf32>
    %487 = vector.shape_cast %388 : vector<8x1xi1> to vector<8x1xi1>
    %488 = vector.broadcast %487 : vector<8x1xi1> to vector<8x6xi1>
    %489 = vector.shape_cast %471 : vector<1x6xf32> to vector<1x6xf32>
    %490 = vector.broadcast %489 : vector<1x6xf32> to vector<8x6xf32>
    %491 = arith.select %488, %490, %269 : vector<8x6xi1>, vector<8x6xf32>
    %492 = arith.addf %270, %397 : vector<1x1xf32>
    %cst_131 = arith.constant 0.000000e+00 : f32
    %493 = vector.broadcast %cst_131 : f32 to vector<1x8xf32>
    %494 = arith.select %386, %291, %493 : vector<1x8xi1>, vector<1x8xf32>
    %cst_132 = arith.constant dense<0.000000e+00> : vector<1xf32>
    %495 = vector.multi_reduction <add>, %494, %cst_132 [1] : vector<1x8xf32> to vector<1xf32>
    %496 = vector.shape_cast %495 : vector<1xf32> to vector<1x1xf32>
    %cst_133 = arith.constant 0.000000e+00 : f32
    %497 = vector.broadcast %cst_133 : f32 to vector<1x8xf32>
    %498 = arith.select %386, %286, %497 : vector<1x8xi1>, vector<1x8xf32>
    %cst_134 = arith.constant dense<0.000000e+00> : vector<1xf32>
    %499 = vector.multi_reduction <add>, %498, %cst_134 [1] : vector<1x8xf32> to vector<1xf32>
    %500 = vector.shape_cast %499 : vector<1xf32> to vector<1x1xf32>
    %501 = arith.mulf %496, %500 : vector<1x1xf32>
    %502 = arith.addf %501, %397 : vector<1x1xf32>
    %cst_135 = arith.constant 1.000000e+00 : f32
    %503 = vector.broadcast %cst_135 : f32 to vector<1x1xf32>
    %504 = arith.addf %496, %503 : vector<1x1xf32>
    %505 = arith.divf %502, %504 : vector<1x1xf32>
    %506 = vector.shape_cast %505 : vector<1x1xf32> to vector<1x1xf32>
    %507 = vector.broadcast %506 : vector<1x1xf32> to vector<1x8xf32>
    %508 = arith.select %386, %507, %286 : vector<1x8xi1>, vector<1x8xf32>
    %cst_136 = arith.constant 1.000000e+00 : f32
    %509 = vector.broadcast %cst_136 : f32 to vector<1x1xf32>
    %510 = arith.addf %496, %509 : vector<1x1xf32>
    %511 = vector.shape_cast %510 : vector<1x1xf32> to vector<1x1xf32>
    %512 = vector.broadcast %511 : vector<1x1xf32> to vector<1x8xf32>
    %513 = arith.select %386, %512, %291 : vector<1x8xi1>, vector<1x8xf32>
    %cst_137 = arith.constant 0.000000e+00 : f32
    %514 = vector.broadcast %cst_137 : f32 to vector<1x8xf32>
    %515 = arith.cmpf oeq, %342, %514 : vector<1x8xf32>
    %cst_138 = arith.constant 9.99999993E-9 : f32
    %516 = vector.broadcast %cst_138 : f32 to vector<1x8xf32>
    %517 = arith.addf %342, %516 : vector<1x8xf32>
    %cst_139 = arith.constant 0.954242527 : f32
    %518 = vector.broadcast %cst_139 : f32 to vector<1x8xf32>
    %519 = arith.divf %518, %517 : vector<1x8xf32>
    %520 = math.sqrt %519 : vector<1x8xf32>
    %cst_140 = arith.constant 1.000000e+00 : f32
    %521 = vector.broadcast %cst_140 : f32 to vector<1x8xf32>
    %522 = arith.select %515, %521, %520 : vector<1x8xi1>, vector<1x8xf32>
    %523 = arith.addf %337, %522 : vector<1x8xf32>
    %cst_141 = arith.constant dense<0xFF800000> : vector<1xf32>
    %524 = vector.multi_reduction <maximumf>, %523, %cst_141 [1] : vector<1x8xf32> to vector<1xf32>
    %525 = vector.shape_cast %524 : vector<1xf32> to vector<1x1xf32>
    %526 = vector.broadcast %525 : vector<1x1xf32> to vector<1x8xf32>
    %527 = arith.cmpf oge, %523, %526 : vector<1x8xf32>
    %cst_142 = arith.constant 8.000000e+00 : f32
    %528 = vector.broadcast %cst_142 : f32 to vector<1x8xf32>
    %529 = arith.select %527, %2, %528 : vector<1x8xi1>, vector<1x8xf32>
    %cst_143 = arith.constant dense<0x7F800000> : vector<1xf32>
    %530 = vector.multi_reduction <minimumf>, %529, %cst_143 [1] : vector<1x8xf32> to vector<1xf32>
    %531 = vector.shape_cast %530 : vector<1xf32> to vector<1x1xf32>
    %532 = vector.broadcast %531 : vector<1x1xf32> to vector<1x8xf32>
    %533 = arith.cmpf oeq, %2, %532 : vector<1x8xf32>
    %cst_144 = arith.constant 0.000000e+00 : f32
    %534 = vector.broadcast %cst_144 : f32 to vector<1x8xf32>
    %535 = arith.select %533, %0, %534 : vector<1x8xi1>, vector<1x8xf32>
    %cst_145 = arith.constant dense<0.000000e+00> : vector<1xf32>
    %536 = vector.multi_reduction <add>, %535, %cst_145 [1] : vector<1x8xf32> to vector<1xf32>
    %537 = vector.shape_cast %536 : vector<1xf32> to vector<1x1xf32>
    %c2 = arith.constant 2 : index
    %538 = memref.load %arg2[%c2] : memref<8xf32, #tpu.memory_space<smem>>
    %539 = vector.broadcast %538 : f32 to vector<1x1xf32>
    %540 = arith.cmpf olt, %539, %537 : vector<1x1xf32>
    %541 = arith.extui %540 : vector<1x1xi1> to vector<1x1xi32>
    %542 = arith.sitofp %541 : vector<1x1xi32> to vector<1x1xf32>
    %543 = arith.addf %321, %542 : vector<1x1xf32>
    %cst_146 = arith.constant 0.000000e+00 : f32
    %544 = vector.broadcast %cst_146 : f32 to vector<1x8xf32>
    %545 = arith.select %533, %342, %544 : vector<1x8xi1>, vector<1x8xf32>
    %cst_147 = arith.constant dense<0.000000e+00> : vector<1xf32>
    %546 = vector.multi_reduction <add>, %545, %cst_147 [1] : vector<1x8xf32> to vector<1xf32>
    %547 = vector.shape_cast %546 : vector<1xf32> to vector<1x1xf32>
    %cst_148 = arith.constant 0.000000e+00 : f32
    %548 = vector.broadcast %cst_148 : f32 to vector<1x8xf32>
    %549 = arith.select %533, %337, %548 : vector<1x8xi1>, vector<1x8xf32>
    %cst_149 = arith.constant dense<0.000000e+00> : vector<1xf32>
    %550 = vector.multi_reduction <add>, %549, %cst_149 [1] : vector<1x8xf32> to vector<1xf32>
    %551 = vector.shape_cast %550 : vector<1xf32> to vector<1x1xf32>
    %552 = arith.mulf %547, %551 : vector<1x1xf32>
    %553 = arith.addf %552, %542 : vector<1x1xf32>
    %cst_150 = arith.constant 1.000000e+00 : f32
    %554 = vector.broadcast %cst_150 : f32 to vector<1x1xf32>
    %555 = arith.addf %547, %554 : vector<1x1xf32>
    %556 = arith.divf %553, %555 : vector<1x1xf32>
    %557 = vector.shape_cast %556 : vector<1x1xf32> to vector<1x1xf32>
    %558 = vector.broadcast %557 : vector<1x1xf32> to vector<1x8xf32>
    %559 = arith.select %533, %558, %337 : vector<1x8xi1>, vector<1x8xf32>
    %cst_151 = arith.constant 1.000000e+00 : f32
    %560 = vector.broadcast %cst_151 : f32 to vector<1x1xf32>
    %561 = arith.addf %547, %560 : vector<1x1xf32>
    %562 = vector.shape_cast %561 : vector<1x1xf32> to vector<1x1xf32>
    %563 = vector.broadcast %562 : vector<1x1xf32> to vector<1x8xf32>
    %564 = arith.select %533, %563, %342 : vector<1x8xi1>, vector<1x8xf32>
    %c2_152 = arith.constant 2 : index
    %c0_153 = arith.constant 0 : index
    %565 = vector.load %arg1[%c2_152, %c0_153] : memref<4x6xf32, #tpu.memory_space<vmem>>, vector<1x6xf32>
    %566 = vector.shape_cast %565 : vector<1x6xf32> to vector<1x6xf32>
    %567 = vector.broadcast %566 : vector<1x6xf32> to vector<6x6xf32>
    %cst_154 = arith.constant 0.000000e+00 : f32
    %568 = vector.broadcast %cst_154 : f32 to vector<6x6xf32>
    %569 = arith.select %41, %567, %568 : vector<6x6xi1>, vector<6x6xf32>
    %cst_155 = arith.constant dense<0.000000e+00> : vector<6xf32>
    %570 = vector.multi_reduction <add>, %569, %cst_155 [1] : vector<6x6xf32> to vector<6xf32>
    %571 = vector.shape_cast %570 : vector<6xf32> to vector<6x1xf32>
    %572 = vector.shape_cast %571 : vector<6x1xf32> to vector<6x1xf32>
    %573 = vector.broadcast %572 : vector<6x1xf32> to vector<6x36xf32>
    %cst_156 = arith.constant 0.000000e+00 : f32
    %574 = vector.broadcast %cst_156 : f32 to vector<6x36xf32>
    %575 = arith.select %38, %573, %574 : vector<6x36xi1>, vector<6x36xf32>
    %cst_157 = arith.constant dense<0.000000e+00> : vector<36xf32>
    %576 = vector.multi_reduction <add>, %575, %cst_157 [0] : vector<6x36xf32> to vector<36xf32>
    %577 = vector.shape_cast %576 : vector<36xf32> to vector<1x36xf32>
    %578 = vector.shape_cast %571 : vector<6x1xf32> to vector<6x1xf32>
    %579 = vector.broadcast %578 : vector<6x1xf32> to vector<6x36xf32>
    %cst_158 = arith.constant 0.000000e+00 : f32
    %580 = vector.broadcast %cst_158 : f32 to vector<6x36xf32>
    %581 = arith.select %15, %579, %580 : vector<6x36xi1>, vector<6x36xf32>
    %cst_159 = arith.constant dense<0.000000e+00> : vector<36xf32>
    %582 = vector.multi_reduction <add>, %581, %cst_159 [0] : vector<6x36xf32> to vector<36xf32>
    %583 = vector.shape_cast %582 : vector<36xf32> to vector<1x36xf32>
    %584 = arith.mulf %583, %577 : vector<1x36xf32>
    %585 = vector.broadcast %565 : vector<1x6xf32> to vector<8x6xf32>
    %586 = arith.mulf %491, %585 : vector<8x6xf32>
    %cst_160 = arith.constant dense<0.000000e+00> : vector<8xf32>
    %587 = vector.multi_reduction <add>, %586, %cst_160 [1] : vector<8x6xf32> to vector<8xf32>
    %588 = vector.shape_cast %587 : vector<8xf32> to vector<8x1xf32>
    %589 = vector.broadcast %584 : vector<1x36xf32> to vector<8x36xf32>
    %590 = arith.mulf %481, %589 : vector<8x36xf32>
    %cst_161 = arith.constant dense<0.000000e+00> : vector<8xf32>
    %591 = vector.multi_reduction <add>, %590, %cst_161 [1] : vector<8x36xf32> to vector<8xf32>
    %592 = vector.shape_cast %591 : vector<8xf32> to vector<8x1xf32>
    %cst_162 = arith.constant 0.000000e+00 : f32
    %593 = vector.broadcast %cst_162 : f32 to vector<8x1xf32>
    %594 = arith.maximumf %592, %593 : vector<8x1xf32>
    %595 = math.sqrt %594 : vector<8x1xf32>
    %cst_163 = arith.constant 2.500000e-01 : f32
    %596 = vector.broadcast %cst_163 : f32 to vector<8x1xf32>
    %597 = arith.mulf %596, %595 : vector<8x1xf32>
    %598 = arith.addf %588, %597 : vector<8x1xf32>
    %cst_164 = arith.constant dense<0xFF800000> : vector<1xf32>
    %599 = vector.multi_reduction <maximumf>, %598, %cst_164 [0] : vector<8x1xf32> to vector<1xf32>
    %600 = vector.shape_cast %599 : vector<1xf32> to vector<1x1xf32>
    %601 = vector.broadcast %600 : vector<1x1xf32> to vector<8x1xf32>
    %602 = arith.cmpf oge, %598, %601 : vector<8x1xf32>
    %cst_165 = arith.constant 8.000000e+00 : f32
    %603 = vector.broadcast %cst_165 : f32 to vector<8x1xf32>
    %604 = arith.select %602, %4, %603 : vector<8x1xi1>, vector<8x1xf32>
    %cst_166 = arith.constant dense<0x7F800000> : vector<1xf32>
    %605 = vector.multi_reduction <minimumf>, %604, %cst_166 [0] : vector<8x1xf32> to vector<1xf32>
    %606 = vector.shape_cast %605 : vector<1xf32> to vector<1x1xf32>
    %607 = vector.broadcast %606 : vector<1x1xf32> to vector<1x8xf32>
    %608 = arith.cmpf oeq, %2, %607 : vector<1x8xf32>
    %609 = vector.broadcast %606 : vector<1x1xf32> to vector<8x1xf32>
    %610 = arith.cmpf oeq, %4, %609 : vector<8x1xf32>
    %cst_167 = arith.constant 0.000000e+00 : f32
    %611 = vector.broadcast %cst_167 : f32 to vector<1x8xf32>
    %612 = arith.select %608, %0, %611 : vector<1x8xi1>, vector<1x8xf32>
    %cst_168 = arith.constant dense<0.000000e+00> : vector<1xf32>
    %613 = vector.multi_reduction <add>, %612, %cst_168 [1] : vector<1x8xf32> to vector<1xf32>
    %614 = vector.shape_cast %613 : vector<1xf32> to vector<1x1xf32>
    %c6 = arith.constant 6 : index
    %615 = memref.load %arg2[%c6] : memref<8xf32, #tpu.memory_space<smem>>
    %616 = vector.broadcast %615 : f32 to vector<1x1xf32>
    %617 = arith.cmpf olt, %616, %614 : vector<1x1xf32>
    %618 = arith.extui %617 : vector<1x1xi1> to vector<1x1xi32>
    %619 = arith.sitofp %618 : vector<1x1xi32> to vector<1x1xf32>
    %cst_169 = arith.constant 1.000000e+00 : f32
    %620 = vector.broadcast %cst_169 : f32 to vector<1x1xf32>
    %621 = arith.cmpf oeq, %619, %620 : vector<1x1xf32>
    %cst_170 = arith.constant 6.000000e-01 : f32
    %cst_171 = arith.constant -1.600000e+01 : f32
    %622 = vector.broadcast %cst_170 : f32 to vector<1x1xf32>
    %623 = vector.broadcast %cst_171 : f32 to vector<1x1xf32>
    %624 = arith.select %621, %622, %623 : vector<1x1xi1>, vector<1x1xf32>
    %cst_172 = arith.constant 0.000000e+00 : f32
    %625 = vector.shape_cast %610 : vector<8x1xi1> to vector<8x1xi1>
    %626 = vector.broadcast %625 : vector<8x1xi1> to vector<8x36xi1>
    %627 = vector.broadcast %cst_172 : f32 to vector<8x36xf32>
    %628 = arith.select %626, %481, %627 : vector<8x36xi1>, vector<8x36xf32>
    %cst_173 = arith.constant dense<0.000000e+00> : vector<36xf32>
    %629 = vector.multi_reduction <add>, %628, %cst_173 [0] : vector<8x36xf32> to vector<36xf32>
    %630 = vector.shape_cast %629 : vector<36xf32> to vector<1x36xf32>
    %cst_174 = arith.constant 0.000000e+00 : f32
    %631 = vector.shape_cast %610 : vector<8x1xi1> to vector<8x1xi1>
    %632 = vector.broadcast %631 : vector<8x1xi1> to vector<8x6xi1>
    %633 = vector.broadcast %cst_174 : f32 to vector<8x6xf32>
    %634 = arith.select %632, %486, %633 : vector<8x6xi1>, vector<8x6xf32>
    %cst_175 = arith.constant dense<0.000000e+00> : vector<6xf32>
    %635 = vector.multi_reduction <add>, %634, %cst_175 [0] : vector<8x6xf32> to vector<6xf32>
    %636 = vector.shape_cast %635 : vector<6xf32> to vector<1x6xf32>
    %cst_176 = arith.constant 0.000000e+00 : f32
    %637 = vector.broadcast %cst_176 : f32 to vector<8x1xf32>
    %638 = arith.select %610, %594, %637 : vector<8x1xi1>, vector<8x1xf32>
    %cst_177 = arith.constant dense<0.000000e+00> : vector<1xf32>
    %639 = vector.multi_reduction <add>, %638, %cst_177 [0] : vector<8x1xf32> to vector<1xf32>
    %640 = vector.shape_cast %639 : vector<1xf32> to vector<1x1xf32>
    %641 = vector.broadcast %624 : vector<1x1xf32> to vector<1x6xf32>
    %642 = arith.mulf %641, %565 : vector<1x6xf32>
    %643 = arith.addf %636, %642 : vector<1x6xf32>
    %644 = arith.mulf %630, %577 : vector<1x36xf32>
    %645 = vector.shape_cast %644 : vector<1x36xf32> to vector<1x36xf32>
    %646 = vector.broadcast %645 : vector<1x36xf32> to vector<6x36xf32>
    %cst_178 = arith.constant 0.000000e+00 : f32
    %647 = vector.broadcast %cst_178 : f32 to vector<6x36xf32>
    %648 = arith.select %15, %646, %647 : vector<6x36xi1>, vector<6x36xf32>
    %cst_179 = arith.constant dense<0.000000e+00> : vector<6xf32>
    %649 = vector.multi_reduction <add>, %648, %cst_179 [1] : vector<6x36xf32> to vector<6xf32>
    %650 = vector.shape_cast %649 : vector<6xf32> to vector<6x1xf32>
    %651 = vector.shape_cast %650 : vector<6x1xf32> to vector<6x1xf32>
    %652 = vector.broadcast %651 : vector<6x1xf32> to vector<6x36xf32>
    %cst_180 = arith.constant 0.000000e+00 : f32
    %653 = vector.broadcast %cst_180 : f32 to vector<6x36xf32>
    %654 = arith.select %15, %652, %653 : vector<6x36xi1>, vector<6x36xf32>
    %cst_181 = arith.constant dense<0.000000e+00> : vector<36xf32>
    %655 = vector.multi_reduction <add>, %654, %cst_181 [0] : vector<6x36xf32> to vector<36xf32>
    %656 = vector.shape_cast %655 : vector<36xf32> to vector<1x36xf32>
    %657 = vector.shape_cast %650 : vector<6x1xf32> to vector<6x1xf32>
    %658 = vector.broadcast %657 : vector<6x1xf32> to vector<6x36xf32>
    %cst_182 = arith.constant 0.000000e+00 : f32
    %659 = vector.broadcast %cst_182 : f32 to vector<6x36xf32>
    %660 = arith.select %38, %658, %659 : vector<6x36xi1>, vector<6x36xf32>
    %cst_183 = arith.constant dense<0.000000e+00> : vector<36xf32>
    %661 = vector.multi_reduction <add>, %660, %cst_183 [0] : vector<6x36xf32> to vector<36xf32>
    %662 = vector.shape_cast %661 : vector<36xf32> to vector<1x36xf32>
    %663 = arith.mulf %656, %662 : vector<1x36xf32>
    %cst_184 = arith.constant 1.000000e+00 : f32
    %664 = vector.broadcast %cst_184 : f32 to vector<1x1xf32>
    %665 = arith.addf %664, %640 : vector<1x1xf32>
    %666 = vector.broadcast %665 : vector<1x1xf32> to vector<1x36xf32>
    %667 = arith.divf %663, %666 : vector<1x36xf32>
    %668 = arith.subf %630, %667 : vector<1x36xf32>
    %669 = vector.shape_cast %643 : vector<1x6xf32> to vector<1x6xf32>
    %670 = vector.broadcast %669 : vector<1x6xf32> to vector<6x6xf32>
    %cst_185 = arith.constant 0.000000e+00 : f32
    %671 = vector.broadcast %cst_185 : f32 to vector<6x6xf32>
    %672 = arith.select %41, %670, %671 : vector<6x6xi1>, vector<6x6xf32>
    %cst_186 = arith.constant dense<0.000000e+00> : vector<6xf32>
    %673 = vector.multi_reduction <add>, %672, %cst_186 [1] : vector<6x6xf32> to vector<6xf32>
    %674 = vector.shape_cast %673 : vector<6xf32> to vector<6x1xf32>
    %675 = vector.shape_cast %674 : vector<6x1xf32> to vector<6x1xf32>
    %676 = vector.broadcast %675 : vector<6x1xf32> to vector<6x36xf32>
    %cst_187 = arith.constant 0.000000e+00 : f32
    %677 = vector.broadcast %cst_187 : f32 to vector<6x36xf32>
    %678 = arith.select %38, %676, %677 : vector<6x36xi1>, vector<6x36xf32>
    %cst_188 = arith.constant dense<0.000000e+00> : vector<36xf32>
    %679 = vector.multi_reduction <add>, %678, %cst_188 [0] : vector<6x36xf32> to vector<36xf32>
    %680 = vector.shape_cast %679 : vector<36xf32> to vector<1x36xf32>
    %681 = arith.mulf %668, %680 : vector<1x36xf32>
    %682 = vector.shape_cast %681 : vector<1x36xf32> to vector<1x36xf32>
    %683 = vector.broadcast %682 : vector<1x36xf32> to vector<6x36xf32>
    %cst_189 = arith.constant 0.000000e+00 : f32
    %684 = vector.broadcast %cst_189 : f32 to vector<6x36xf32>
    %685 = arith.select %15, %683, %684 : vector<6x36xi1>, vector<6x36xf32>
    %cst_190 = arith.constant dense<0.000000e+00> : vector<6xf32>
    %686 = vector.multi_reduction <add>, %685, %cst_190 [1] : vector<6x36xf32> to vector<6xf32>
    %687 = vector.shape_cast %686 : vector<6xf32> to vector<6x1xf32>
    %688 = vector.shape_cast %687 : vector<6x1xf32> to vector<6x1xf32>
    %689 = vector.broadcast %688 : vector<6x1xf32> to vector<6x6xf32>
    %cst_191 = arith.constant 0.000000e+00 : f32
    %690 = vector.broadcast %cst_191 : f32 to vector<6x6xf32>
    %691 = arith.select %41, %689, %690 : vector<6x6xi1>, vector<6x6xf32>
    %cst_192 = arith.constant dense<0.000000e+00> : vector<6xf32>
    %692 = vector.multi_reduction <add>, %691, %cst_192 [0] : vector<6x6xf32> to vector<6xf32>
    %693 = vector.shape_cast %692 : vector<6xf32> to vector<1x6xf32>
    %694 = vector.broadcast %584 : vector<1x36xf32> to vector<8x36xf32>
    %695 = arith.addf %476, %694 : vector<8x36xf32>
    %696 = vector.shape_cast %610 : vector<8x1xi1> to vector<8x1xi1>
    %697 = vector.broadcast %696 : vector<8x1xi1> to vector<8x36xi1>
    %698 = arith.select %697, %695, %476 : vector<8x36xi1>, vector<8x36xf32>
    %699 = vector.shape_cast %610 : vector<8x1xi1> to vector<8x1xi1>
    %700 = vector.broadcast %699 : vector<8x1xi1> to vector<8x36xi1>
    %701 = vector.shape_cast %668 : vector<1x36xf32> to vector<1x36xf32>
    %702 = vector.broadcast %701 : vector<1x36xf32> to vector<8x36xf32>
    %703 = arith.select %700, %702, %481 : vector<8x36xi1>, vector<8x36xf32>
    %704 = vector.shape_cast %610 : vector<8x1xi1> to vector<8x1xi1>
    %705 = vector.broadcast %704 : vector<8x1xi1> to vector<8x6xi1>
    %706 = vector.shape_cast %643 : vector<1x6xf32> to vector<1x6xf32>
    %707 = vector.broadcast %706 : vector<1x6xf32> to vector<8x6xf32>
    %708 = arith.select %705, %707, %486 : vector<8x6xi1>, vector<8x6xf32>
    %709 = vector.shape_cast %610 : vector<8x1xi1> to vector<8x1xi1>
    %710 = vector.broadcast %709 : vector<8x1xi1> to vector<8x6xi1>
    %711 = vector.shape_cast %693 : vector<1x6xf32> to vector<1x6xf32>
    %712 = vector.broadcast %711 : vector<1x6xf32> to vector<8x6xf32>
    %713 = arith.select %710, %712, %491 : vector<8x6xi1>, vector<8x6xf32>
    %714 = arith.addf %492, %619 : vector<1x1xf32>
    %cst_193 = arith.constant 0.000000e+00 : f32
    %715 = vector.broadcast %cst_193 : f32 to vector<1x8xf32>
    %716 = arith.select %608, %513, %715 : vector<1x8xi1>, vector<1x8xf32>
    %cst_194 = arith.constant dense<0.000000e+00> : vector<1xf32>
    %717 = vector.multi_reduction <add>, %716, %cst_194 [1] : vector<1x8xf32> to vector<1xf32>
    %718 = vector.shape_cast %717 : vector<1xf32> to vector<1x1xf32>
    %cst_195 = arith.constant 0.000000e+00 : f32
    %719 = vector.broadcast %cst_195 : f32 to vector<1x8xf32>
    %720 = arith.select %608, %508, %719 : vector<1x8xi1>, vector<1x8xf32>
    %cst_196 = arith.constant dense<0.000000e+00> : vector<1xf32>
    %721 = vector.multi_reduction <add>, %720, %cst_196 [1] : vector<1x8xf32> to vector<1xf32>
    %722 = vector.shape_cast %721 : vector<1xf32> to vector<1x1xf32>
    %723 = arith.mulf %718, %722 : vector<1x1xf32>
    %724 = arith.addf %723, %619 : vector<1x1xf32>
    %cst_197 = arith.constant 1.000000e+00 : f32
    %725 = vector.broadcast %cst_197 : f32 to vector<1x1xf32>
    %726 = arith.addf %718, %725 : vector<1x1xf32>
    %727 = arith.divf %724, %726 : vector<1x1xf32>
    %728 = vector.shape_cast %727 : vector<1x1xf32> to vector<1x1xf32>
    %729 = vector.broadcast %728 : vector<1x1xf32> to vector<1x8xf32>
    %730 = arith.select %608, %729, %508 : vector<1x8xi1>, vector<1x8xf32>
    %cst_198 = arith.constant 1.000000e+00 : f32
    %731 = vector.broadcast %cst_198 : f32 to vector<1x1xf32>
    %732 = arith.addf %718, %731 : vector<1x1xf32>
    %733 = vector.shape_cast %732 : vector<1x1xf32> to vector<1x1xf32>
    %734 = vector.broadcast %733 : vector<1x1xf32> to vector<1x8xf32>
    %735 = arith.select %608, %734, %513 : vector<1x8xi1>, vector<1x8xf32>
    %cst_199 = arith.constant 0.000000e+00 : f32
    %736 = vector.broadcast %cst_199 : f32 to vector<1x8xf32>
    %737 = arith.cmpf oeq, %564, %736 : vector<1x8xf32>
    %cst_200 = arith.constant 9.99999993E-9 : f32
    %738 = vector.broadcast %cst_200 : f32 to vector<1x8xf32>
    %739 = arith.addf %564, %738 : vector<1x8xf32>
    %cst_201 = arith.constant 1.204120e+00 : f32
    %740 = vector.broadcast %cst_201 : f32 to vector<1x8xf32>
    %741 = arith.divf %740, %739 : vector<1x8xf32>
    %742 = math.sqrt %741 : vector<1x8xf32>
    %cst_202 = arith.constant 1.000000e+00 : f32
    %743 = vector.broadcast %cst_202 : f32 to vector<1x8xf32>
    %744 = arith.select %737, %743, %742 : vector<1x8xi1>, vector<1x8xf32>
    %745 = arith.addf %559, %744 : vector<1x8xf32>
    %cst_203 = arith.constant dense<0xFF800000> : vector<1xf32>
    %746 = vector.multi_reduction <maximumf>, %745, %cst_203 [1] : vector<1x8xf32> to vector<1xf32>
    %747 = vector.shape_cast %746 : vector<1xf32> to vector<1x1xf32>
    %748 = vector.broadcast %747 : vector<1x1xf32> to vector<1x8xf32>
    %749 = arith.cmpf oge, %745, %748 : vector<1x8xf32>
    %cst_204 = arith.constant 8.000000e+00 : f32
    %750 = vector.broadcast %cst_204 : f32 to vector<1x8xf32>
    %751 = arith.select %749, %2, %750 : vector<1x8xi1>, vector<1x8xf32>
    %cst_205 = arith.constant dense<0x7F800000> : vector<1xf32>
    %752 = vector.multi_reduction <minimumf>, %751, %cst_205 [1] : vector<1x8xf32> to vector<1xf32>
    %753 = vector.shape_cast %752 : vector<1xf32> to vector<1x1xf32>
    %754 = vector.broadcast %753 : vector<1x1xf32> to vector<1x8xf32>
    %755 = arith.cmpf oeq, %2, %754 : vector<1x8xf32>
    %cst_206 = arith.constant 0.000000e+00 : f32
    %756 = vector.broadcast %cst_206 : f32 to vector<1x8xf32>
    %757 = arith.select %755, %0, %756 : vector<1x8xi1>, vector<1x8xf32>
    %cst_207 = arith.constant dense<0.000000e+00> : vector<1xf32>
    %758 = vector.multi_reduction <add>, %757, %cst_207 [1] : vector<1x8xf32> to vector<1xf32>
    %759 = vector.shape_cast %758 : vector<1xf32> to vector<1x1xf32>
    %c3 = arith.constant 3 : index
    %760 = memref.load %arg2[%c3] : memref<8xf32, #tpu.memory_space<smem>>
    %761 = vector.broadcast %760 : f32 to vector<1x1xf32>
    %762 = arith.cmpf olt, %761, %759 : vector<1x1xf32>
    %763 = arith.extui %762 : vector<1x1xi1> to vector<1x1xi32>
    %764 = arith.sitofp %763 : vector<1x1xi32> to vector<1x1xf32>
    %765 = arith.addf %543, %764 : vector<1x1xf32>
    %cst_208 = arith.constant 0.000000e+00 : f32
    %766 = vector.broadcast %cst_208 : f32 to vector<1x8xf32>
    %767 = arith.select %755, %564, %766 : vector<1x8xi1>, vector<1x8xf32>
    %cst_209 = arith.constant dense<0.000000e+00> : vector<1xf32>
    %768 = vector.multi_reduction <add>, %767, %cst_209 [1] : vector<1x8xf32> to vector<1xf32>
    %769 = vector.shape_cast %768 : vector<1xf32> to vector<1x1xf32>
    %cst_210 = arith.constant 0.000000e+00 : f32
    %770 = vector.broadcast %cst_210 : f32 to vector<1x8xf32>
    %771 = arith.select %755, %559, %770 : vector<1x8xi1>, vector<1x8xf32>
    %cst_211 = arith.constant dense<0.000000e+00> : vector<1xf32>
    %772 = vector.multi_reduction <add>, %771, %cst_211 [1] : vector<1x8xf32> to vector<1xf32>
    %773 = vector.shape_cast %772 : vector<1xf32> to vector<1x1xf32>
    %774 = arith.mulf %769, %773 : vector<1x1xf32>
    %775 = arith.addf %774, %764 : vector<1x1xf32>
    %cst_212 = arith.constant 1.000000e+00 : f32
    %776 = vector.broadcast %cst_212 : f32 to vector<1x1xf32>
    %777 = arith.addf %769, %776 : vector<1x1xf32>
    %778 = arith.divf %775, %777 : vector<1x1xf32>
    %779 = vector.shape_cast %778 : vector<1x1xf32> to vector<1x1xf32>
    %780 = vector.broadcast %779 : vector<1x1xf32> to vector<1x8xf32>
    %781 = arith.select %755, %780, %559 : vector<1x8xi1>, vector<1x8xf32>
    %cst_213 = arith.constant 1.000000e+00 : f32
    %782 = vector.broadcast %cst_213 : f32 to vector<1x1xf32>
    %783 = arith.addf %769, %782 : vector<1x1xf32>
    %784 = vector.shape_cast %783 : vector<1x1xf32> to vector<1x1xf32>
    %785 = vector.broadcast %784 : vector<1x1xf32> to vector<1x8xf32>
    %786 = arith.select %755, %785, %564 : vector<1x8xi1>, vector<1x8xf32>
    %c3_214 = arith.constant 3 : index
    %c0_215 = arith.constant 0 : index
    %787 = vector.load %arg1[%c3_214, %c0_215] : memref<4x6xf32, #tpu.memory_space<vmem>>, vector<1x6xf32>
    %788 = vector.shape_cast %787 : vector<1x6xf32> to vector<1x6xf32>
    %789 = vector.broadcast %788 : vector<1x6xf32> to vector<6x6xf32>
    %cst_216 = arith.constant 0.000000e+00 : f32
    %790 = vector.broadcast %cst_216 : f32 to vector<6x6xf32>
    %791 = arith.select %41, %789, %790 : vector<6x6xi1>, vector<6x6xf32>
    %cst_217 = arith.constant dense<0.000000e+00> : vector<6xf32>
    %792 = vector.multi_reduction <add>, %791, %cst_217 [1] : vector<6x6xf32> to vector<6xf32>
    %793 = vector.shape_cast %792 : vector<6xf32> to vector<6x1xf32>
    %794 = vector.shape_cast %793 : vector<6x1xf32> to vector<6x1xf32>
    %795 = vector.broadcast %794 : vector<6x1xf32> to vector<6x36xf32>
    %cst_218 = arith.constant 0.000000e+00 : f32
    %796 = vector.broadcast %cst_218 : f32 to vector<6x36xf32>
    %797 = arith.select %38, %795, %796 : vector<6x36xi1>, vector<6x36xf32>
    %cst_219 = arith.constant dense<0.000000e+00> : vector<36xf32>
    %798 = vector.multi_reduction <add>, %797, %cst_219 [0] : vector<6x36xf32> to vector<36xf32>
    %799 = vector.shape_cast %798 : vector<36xf32> to vector<1x36xf32>
    %800 = vector.shape_cast %793 : vector<6x1xf32> to vector<6x1xf32>
    %801 = vector.broadcast %800 : vector<6x1xf32> to vector<6x36xf32>
    %cst_220 = arith.constant 0.000000e+00 : f32
    %802 = vector.broadcast %cst_220 : f32 to vector<6x36xf32>
    %803 = arith.select %15, %801, %802 : vector<6x36xi1>, vector<6x36xf32>
    %cst_221 = arith.constant dense<0.000000e+00> : vector<36xf32>
    %804 = vector.multi_reduction <add>, %803, %cst_221 [0] : vector<6x36xf32> to vector<36xf32>
    %805 = vector.shape_cast %804 : vector<36xf32> to vector<1x36xf32>
    %806 = arith.mulf %805, %799 : vector<1x36xf32>
    %807 = vector.broadcast %787 : vector<1x6xf32> to vector<8x6xf32>
    %808 = arith.mulf %713, %807 : vector<8x6xf32>
    %cst_222 = arith.constant dense<0.000000e+00> : vector<8xf32>
    %809 = vector.multi_reduction <add>, %808, %cst_222 [1] : vector<8x6xf32> to vector<8xf32>
    %810 = vector.shape_cast %809 : vector<8xf32> to vector<8x1xf32>
    %811 = vector.broadcast %806 : vector<1x36xf32> to vector<8x36xf32>
    %812 = arith.mulf %703, %811 : vector<8x36xf32>
    %cst_223 = arith.constant dense<0.000000e+00> : vector<8xf32>
    %813 = vector.multi_reduction <add>, %812, %cst_223 [1] : vector<8x36xf32> to vector<8xf32>
    %814 = vector.shape_cast %813 : vector<8xf32> to vector<8x1xf32>
    %cst_224 = arith.constant 0.000000e+00 : f32
    %815 = vector.broadcast %cst_224 : f32 to vector<8x1xf32>
    %816 = arith.maximumf %814, %815 : vector<8x1xf32>
    %817 = math.sqrt %816 : vector<8x1xf32>
    %cst_225 = arith.constant 2.500000e-01 : f32
    %818 = vector.broadcast %cst_225 : f32 to vector<8x1xf32>
    %819 = arith.mulf %818, %817 : vector<8x1xf32>
    %820 = arith.addf %810, %819 : vector<8x1xf32>
    %cst_226 = arith.constant dense<0xFF800000> : vector<1xf32>
    %821 = vector.multi_reduction <maximumf>, %820, %cst_226 [0] : vector<8x1xf32> to vector<1xf32>
    %822 = vector.shape_cast %821 : vector<1xf32> to vector<1x1xf32>
    %823 = vector.broadcast %822 : vector<1x1xf32> to vector<8x1xf32>
    %824 = arith.cmpf oge, %820, %823 : vector<8x1xf32>
    %cst_227 = arith.constant 8.000000e+00 : f32
    %825 = vector.broadcast %cst_227 : f32 to vector<8x1xf32>
    %826 = arith.select %824, %4, %825 : vector<8x1xi1>, vector<8x1xf32>
    %cst_228 = arith.constant dense<0x7F800000> : vector<1xf32>
    %827 = vector.multi_reduction <minimumf>, %826, %cst_228 [0] : vector<8x1xf32> to vector<1xf32>
    %828 = vector.shape_cast %827 : vector<1xf32> to vector<1x1xf32>
    %829 = vector.broadcast %828 : vector<1x1xf32> to vector<1x8xf32>
    %830 = arith.cmpf oeq, %2, %829 : vector<1x8xf32>
    %831 = vector.broadcast %828 : vector<1x1xf32> to vector<8x1xf32>
    %832 = arith.cmpf oeq, %4, %831 : vector<8x1xf32>
    %cst_229 = arith.constant 0.000000e+00 : f32
    %833 = vector.broadcast %cst_229 : f32 to vector<1x8xf32>
    %834 = arith.select %830, %0, %833 : vector<1x8xi1>, vector<1x8xf32>
    %cst_230 = arith.constant dense<0.000000e+00> : vector<1xf32>
    %835 = vector.multi_reduction <add>, %834, %cst_230 [1] : vector<1x8xf32> to vector<1xf32>
    %836 = vector.shape_cast %835 : vector<1xf32> to vector<1x1xf32>
    %c7 = arith.constant 7 : index
    %837 = memref.load %arg2[%c7] : memref<8xf32, #tpu.memory_space<smem>>
    %838 = vector.broadcast %837 : f32 to vector<1x1xf32>
    %839 = arith.cmpf olt, %838, %836 : vector<1x1xf32>
    %840 = arith.extui %839 : vector<1x1xi1> to vector<1x1xi32>
    %841 = arith.sitofp %840 : vector<1x1xi32> to vector<1x1xf32>
    %cst_231 = arith.constant 1.000000e+00 : f32
    %842 = vector.broadcast %cst_231 : f32 to vector<1x1xf32>
    %843 = arith.cmpf oeq, %841, %842 : vector<1x1xf32>
    %cst_232 = arith.constant 6.000000e-01 : f32
    %cst_233 = arith.constant -1.600000e+01 : f32
    %844 = vector.broadcast %cst_232 : f32 to vector<1x1xf32>
    %845 = vector.broadcast %cst_233 : f32 to vector<1x1xf32>
    %846 = arith.select %843, %844, %845 : vector<1x1xi1>, vector<1x1xf32>
    %cst_234 = arith.constant 0.000000e+00 : f32
    %847 = vector.shape_cast %832 : vector<8x1xi1> to vector<8x1xi1>
    %848 = vector.broadcast %847 : vector<8x1xi1> to vector<8x36xi1>
    %849 = vector.broadcast %cst_234 : f32 to vector<8x36xf32>
    %850 = arith.select %848, %703, %849 : vector<8x36xi1>, vector<8x36xf32>
    %cst_235 = arith.constant dense<0.000000e+00> : vector<36xf32>
    %851 = vector.multi_reduction <add>, %850, %cst_235 [0] : vector<8x36xf32> to vector<36xf32>
    %852 = vector.shape_cast %851 : vector<36xf32> to vector<1x36xf32>
    %cst_236 = arith.constant 0.000000e+00 : f32
    %853 = vector.shape_cast %832 : vector<8x1xi1> to vector<8x1xi1>
    %854 = vector.broadcast %853 : vector<8x1xi1> to vector<8x6xi1>
    %855 = vector.broadcast %cst_236 : f32 to vector<8x6xf32>
    %856 = arith.select %854, %708, %855 : vector<8x6xi1>, vector<8x6xf32>
    %cst_237 = arith.constant dense<0.000000e+00> : vector<6xf32>
    %857 = vector.multi_reduction <add>, %856, %cst_237 [0] : vector<8x6xf32> to vector<6xf32>
    %858 = vector.shape_cast %857 : vector<6xf32> to vector<1x6xf32>
    %cst_238 = arith.constant 0.000000e+00 : f32
    %859 = vector.broadcast %cst_238 : f32 to vector<8x1xf32>
    %860 = arith.select %832, %816, %859 : vector<8x1xi1>, vector<8x1xf32>
    %cst_239 = arith.constant dense<0.000000e+00> : vector<1xf32>
    %861 = vector.multi_reduction <add>, %860, %cst_239 [0] : vector<8x1xf32> to vector<1xf32>
    %862 = vector.shape_cast %861 : vector<1xf32> to vector<1x1xf32>
    %863 = vector.broadcast %846 : vector<1x1xf32> to vector<1x6xf32>
    %864 = arith.mulf %863, %787 : vector<1x6xf32>
    %865 = arith.addf %858, %864 : vector<1x6xf32>
    %866 = arith.mulf %852, %799 : vector<1x36xf32>
    %867 = vector.shape_cast %866 : vector<1x36xf32> to vector<1x36xf32>
    %868 = vector.broadcast %867 : vector<1x36xf32> to vector<6x36xf32>
    %cst_240 = arith.constant 0.000000e+00 : f32
    %869 = vector.broadcast %cst_240 : f32 to vector<6x36xf32>
    %870 = arith.select %15, %868, %869 : vector<6x36xi1>, vector<6x36xf32>
    %cst_241 = arith.constant dense<0.000000e+00> : vector<6xf32>
    %871 = vector.multi_reduction <add>, %870, %cst_241 [1] : vector<6x36xf32> to vector<6xf32>
    %872 = vector.shape_cast %871 : vector<6xf32> to vector<6x1xf32>
    %873 = vector.shape_cast %872 : vector<6x1xf32> to vector<6x1xf32>
    %874 = vector.broadcast %873 : vector<6x1xf32> to vector<6x36xf32>
    %cst_242 = arith.constant 0.000000e+00 : f32
    %875 = vector.broadcast %cst_242 : f32 to vector<6x36xf32>
    %876 = arith.select %15, %874, %875 : vector<6x36xi1>, vector<6x36xf32>
    %cst_243 = arith.constant dense<0.000000e+00> : vector<36xf32>
    %877 = vector.multi_reduction <add>, %876, %cst_243 [0] : vector<6x36xf32> to vector<36xf32>
    %878 = vector.shape_cast %877 : vector<36xf32> to vector<1x36xf32>
    %879 = vector.shape_cast %872 : vector<6x1xf32> to vector<6x1xf32>
    %880 = vector.broadcast %879 : vector<6x1xf32> to vector<6x36xf32>
    %cst_244 = arith.constant 0.000000e+00 : f32
    %881 = vector.broadcast %cst_244 : f32 to vector<6x36xf32>
    %882 = arith.select %38, %880, %881 : vector<6x36xi1>, vector<6x36xf32>
    %cst_245 = arith.constant dense<0.000000e+00> : vector<36xf32>
    %883 = vector.multi_reduction <add>, %882, %cst_245 [0] : vector<6x36xf32> to vector<36xf32>
    %884 = vector.shape_cast %883 : vector<36xf32> to vector<1x36xf32>
    %885 = arith.mulf %878, %884 : vector<1x36xf32>
    %cst_246 = arith.constant 1.000000e+00 : f32
    %886 = vector.broadcast %cst_246 : f32 to vector<1x1xf32>
    %887 = arith.addf %886, %862 : vector<1x1xf32>
    %888 = vector.broadcast %887 : vector<1x1xf32> to vector<1x36xf32>
    %889 = arith.divf %885, %888 : vector<1x36xf32>
    %890 = arith.subf %852, %889 : vector<1x36xf32>
    %891 = vector.shape_cast %865 : vector<1x6xf32> to vector<1x6xf32>
    %892 = vector.broadcast %891 : vector<1x6xf32> to vector<6x6xf32>
    %cst_247 = arith.constant 0.000000e+00 : f32
    %893 = vector.broadcast %cst_247 : f32 to vector<6x6xf32>
    %894 = arith.select %41, %892, %893 : vector<6x6xi1>, vector<6x6xf32>
    %cst_248 = arith.constant dense<0.000000e+00> : vector<6xf32>
    %895 = vector.multi_reduction <add>, %894, %cst_248 [1] : vector<6x6xf32> to vector<6xf32>
    %896 = vector.shape_cast %895 : vector<6xf32> to vector<6x1xf32>
    %897 = vector.shape_cast %896 : vector<6x1xf32> to vector<6x1xf32>
    %898 = vector.broadcast %897 : vector<6x1xf32> to vector<6x36xf32>
    %cst_249 = arith.constant 0.000000e+00 : f32
    %899 = vector.broadcast %cst_249 : f32 to vector<6x36xf32>
    %900 = arith.select %38, %898, %899 : vector<6x36xi1>, vector<6x36xf32>
    %cst_250 = arith.constant dense<0.000000e+00> : vector<36xf32>
    %901 = vector.multi_reduction <add>, %900, %cst_250 [0] : vector<6x36xf32> to vector<36xf32>
    %902 = vector.shape_cast %901 : vector<36xf32> to vector<1x36xf32>
    %903 = arith.mulf %890, %902 : vector<1x36xf32>
    %904 = vector.shape_cast %903 : vector<1x36xf32> to vector<1x36xf32>
    %905 = vector.broadcast %904 : vector<1x36xf32> to vector<6x36xf32>
    %cst_251 = arith.constant 0.000000e+00 : f32
    %906 = vector.broadcast %cst_251 : f32 to vector<6x36xf32>
    %907 = arith.select %15, %905, %906 : vector<6x36xi1>, vector<6x36xf32>
    %cst_252 = arith.constant dense<0.000000e+00> : vector<6xf32>
    %908 = vector.multi_reduction <add>, %907, %cst_252 [1] : vector<6x36xf32> to vector<6xf32>
    %909 = vector.shape_cast %908 : vector<6xf32> to vector<6x1xf32>
    %910 = vector.shape_cast %909 : vector<6x1xf32> to vector<6x1xf32>
    %911 = vector.broadcast %910 : vector<6x1xf32> to vector<6x6xf32>
    %cst_253 = arith.constant 0.000000e+00 : f32
    %912 = vector.broadcast %cst_253 : f32 to vector<6x6xf32>
    %913 = arith.select %41, %911, %912 : vector<6x6xi1>, vector<6x6xf32>
    %cst_254 = arith.constant dense<0.000000e+00> : vector<6xf32>
    %914 = vector.multi_reduction <add>, %913, %cst_254 [0] : vector<6x6xf32> to vector<6xf32>
    %915 = vector.shape_cast %914 : vector<6xf32> to vector<1x6xf32>
    %916 = vector.broadcast %806 : vector<1x36xf32> to vector<8x36xf32>
    %917 = arith.addf %698, %916 : vector<8x36xf32>
    %918 = vector.shape_cast %832 : vector<8x1xi1> to vector<8x1xi1>
    %919 = vector.broadcast %918 : vector<8x1xi1> to vector<8x36xi1>
    %920 = arith.select %919, %917, %698 : vector<8x36xi1>, vector<8x36xf32>
    %921 = vector.shape_cast %832 : vector<8x1xi1> to vector<8x1xi1>
    %922 = vector.broadcast %921 : vector<8x1xi1> to vector<8x36xi1>
    %923 = vector.shape_cast %890 : vector<1x36xf32> to vector<1x36xf32>
    %924 = vector.broadcast %923 : vector<1x36xf32> to vector<8x36xf32>
    %925 = arith.select %922, %924, %703 : vector<8x36xi1>, vector<8x36xf32>
    %926 = vector.shape_cast %832 : vector<8x1xi1> to vector<8x1xi1>
    %927 = vector.broadcast %926 : vector<8x1xi1> to vector<8x6xi1>
    %928 = vector.shape_cast %865 : vector<1x6xf32> to vector<1x6xf32>
    %929 = vector.broadcast %928 : vector<1x6xf32> to vector<8x6xf32>
    %930 = arith.select %927, %929, %708 : vector<8x6xi1>, vector<8x6xf32>
    %931 = vector.shape_cast %832 : vector<8x1xi1> to vector<8x1xi1>
    %932 = vector.broadcast %931 : vector<8x1xi1> to vector<8x6xi1>
    %933 = vector.shape_cast %915 : vector<1x6xf32> to vector<1x6xf32>
    %934 = vector.broadcast %933 : vector<1x6xf32> to vector<8x6xf32>
    %935 = arith.select %932, %934, %713 : vector<8x6xi1>, vector<8x6xf32>
    %936 = arith.addf %714, %841 : vector<1x1xf32>
    %cst_255 = arith.constant 0.000000e+00 : f32
    %937 = vector.broadcast %cst_255 : f32 to vector<1x8xf32>
    %938 = arith.select %830, %735, %937 : vector<1x8xi1>, vector<1x8xf32>
    %cst_256 = arith.constant dense<0.000000e+00> : vector<1xf32>
    %939 = vector.multi_reduction <add>, %938, %cst_256 [1] : vector<1x8xf32> to vector<1xf32>
    %940 = vector.shape_cast %939 : vector<1xf32> to vector<1x1xf32>
    %cst_257 = arith.constant 0.000000e+00 : f32
    %941 = vector.broadcast %cst_257 : f32 to vector<1x8xf32>
    %942 = arith.select %830, %730, %941 : vector<1x8xi1>, vector<1x8xf32>
    %cst_258 = arith.constant dense<0.000000e+00> : vector<1xf32>
    %943 = vector.multi_reduction <add>, %942, %cst_258 [1] : vector<1x8xf32> to vector<1xf32>
    %944 = vector.shape_cast %943 : vector<1xf32> to vector<1x1xf32>
    %945 = arith.mulf %940, %944 : vector<1x1xf32>
    %946 = arith.addf %945, %841 : vector<1x1xf32>
    %cst_259 = arith.constant 1.000000e+00 : f32
    %947 = vector.broadcast %cst_259 : f32 to vector<1x1xf32>
    %948 = arith.addf %940, %947 : vector<1x1xf32>
    %949 = arith.divf %946, %948 : vector<1x1xf32>
    %950 = vector.shape_cast %949 : vector<1x1xf32> to vector<1x1xf32>
    %951 = vector.broadcast %950 : vector<1x1xf32> to vector<1x8xf32>
    %952 = arith.select %830, %951, %730 : vector<1x8xi1>, vector<1x8xf32>
    %cst_260 = arith.constant 1.000000e+00 : f32
    %953 = vector.broadcast %cst_260 : f32 to vector<1x1xf32>
    %954 = arith.addf %940, %953 : vector<1x1xf32>
    %955 = vector.shape_cast %954 : vector<1x1xf32> to vector<1x1xf32>
    %956 = vector.broadcast %955 : vector<1x1xf32> to vector<1x8xf32>
    %957 = arith.select %830, %956, %735 : vector<1x8xi1>, vector<1x8xf32>
    %cst_261 = arith.constant 0.000000e+00 : f32
    %958 = vector.broadcast %cst_261 : f32 to vector<8x128xf32>
    %c0_262 = arith.constant 0 : index
    %c0_263 = arith.constant 0 : index
    %959 = vector.load %arg3[%c0_262, %c0_263] : memref<8x128xf32, #tpu.memory_space<vmem>>, vector<8x128xf32>
    tpu.vector_store %arg3[%c0_262, %c0_263], %958 {strides = array<i32>} : memref<8x128xf32, #tpu.memory_space<vmem>>, vector<8x128xf32>,
    %c0_264 = arith.constant 0 : index
    %c0_265 = arith.constant 0 : index
    %960 = vector.load %arg3[%c0_264, %c0_265] : memref<8x128xf32, #tpu.memory_space<vmem>>, vector<8x36xf32>
    tpu.vector_store %arg3[%c0_264, %c0_265], %925 {strides = array<i32>} : memref<8x128xf32, #tpu.memory_space<vmem>>, vector<8x36xf32>,
    %c0_266 = arith.constant 0 : index
    %c36 = arith.constant 36 : index
    %961 = vector.load %arg3[%c0_266, %c36] : memref<8x128xf32, #tpu.memory_space<vmem>>, vector<8x36xf32>
    tpu.vector_store %arg3[%c0_266, %c36], %920 {strides = array<i32>} : memref<8x128xf32, #tpu.memory_space<vmem>>, vector<8x36xf32>,
    %c0_267 = arith.constant 0 : index
    %c72 = arith.constant 72 : index
    %962 = vector.load %arg3[%c0_267, %c72] : memref<8x128xf32, #tpu.memory_space<vmem>>, vector<8x6xf32>
    tpu.vector_store %arg3[%c0_267, %c72], %935 {strides = array<i32>} : memref<8x128xf32, #tpu.memory_space<vmem>>, vector<8x6xf32>,
    %c0_268 = arith.constant 0 : index
    %c78 = arith.constant 78 : index
    %963 = vector.load %arg3[%c0_268, %c78] : memref<8x128xf32, #tpu.memory_space<vmem>>, vector<8x6xf32>
    tpu.vector_store %arg3[%c0_268, %c78], %930 {strides = array<i32>} : memref<8x128xf32, #tpu.memory_space<vmem>>, vector<8x6xf32>,
    %964 = vector.shape_cast %781 : vector<1x8xf32> to vector<1x8xf32>
    %965 = vector.broadcast %964 : vector<1x8xf32> to vector<8x8xf32>
    %c0_269 = arith.constant 0 : index
    %c84 = arith.constant 84 : index
    %966 = vector.load %arg3[%c0_269, %c84] : memref<8x128xf32, #tpu.memory_space<vmem>>, vector<8x8xf32>
    tpu.vector_store %arg3[%c0_269, %c84], %965 {strides = array<i32>} : memref<8x128xf32, #tpu.memory_space<vmem>>, vector<8x8xf32>,
    %967 = vector.shape_cast %786 : vector<1x8xf32> to vector<1x8xf32>
    %968 = vector.broadcast %967 : vector<1x8xf32> to vector<8x8xf32>
    %c0_270 = arith.constant 0 : index
    %c92 = arith.constant 92 : index
    %969 = vector.load %arg3[%c0_270, %c92] : memref<8x128xf32, #tpu.memory_space<vmem>>, vector<8x8xf32>
    tpu.vector_store %arg3[%c0_270, %c92], %968 {strides = array<i32>} : memref<8x128xf32, #tpu.memory_space<vmem>>, vector<8x8xf32>,
    %970 = vector.shape_cast %952 : vector<1x8xf32> to vector<1x8xf32>
    %971 = vector.broadcast %970 : vector<1x8xf32> to vector<8x8xf32>
    %c0_271 = arith.constant 0 : index
    %c100 = arith.constant 100 : index
    %972 = vector.load %arg3[%c0_271, %c100] : memref<8x128xf32, #tpu.memory_space<vmem>>, vector<8x8xf32>
    tpu.vector_store %arg3[%c0_271, %c100], %971 {strides = array<i32>} : memref<8x128xf32, #tpu.memory_space<vmem>>, vector<8x8xf32>,
    %973 = vector.shape_cast %957 : vector<1x8xf32> to vector<1x8xf32>
    %974 = vector.broadcast %973 : vector<1x8xf32> to vector<8x8xf32>
    %c0_272 = arith.constant 0 : index
    %c108 = arith.constant 108 : index
    %975 = vector.load %arg3[%c0_272, %c108] : memref<8x128xf32, #tpu.memory_space<vmem>>, vector<8x8xf32>
    tpu.vector_store %arg3[%c0_272, %c108], %974 {strides = array<i32>} : memref<8x128xf32, #tpu.memory_space<vmem>>, vector<8x8xf32>,
    %976 = vector.shape_cast %765 : vector<1x1xf32> to vector<1x1xf32>
    %977 = vector.broadcast %976 : vector<1x1xf32> to vector<8x1xf32>
    %c0_273 = arith.constant 0 : index
    %c116 = arith.constant 116 : index
    %978 = vector.load %arg3[%c0_273, %c116] : memref<8x128xf32, #tpu.memory_space<vmem>>, vector<8x1xf32>
    tpu.vector_store %arg3[%c0_273, %c116], %977 {strides = array<i32>} : memref<8x128xf32, #tpu.memory_space<vmem>>, vector<8x1xf32>,
    %979 = vector.shape_cast %936 : vector<1x1xf32> to vector<1x1xf32>
    %980 = vector.broadcast %979 : vector<1x1xf32> to vector<8x1xf32>
    %c0_274 = arith.constant 0 : index
    %c117 = arith.constant 117 : index
    %981 = vector.load %arg3[%c0_274, %c117] : memref<8x128xf32, #tpu.memory_space<vmem>>, vector<8x1xf32>
    tpu.vector_store %arg3[%c0_274, %c117], %980 {strides = array<i32>} : memref<8x128xf32, #tpu.memory_space<vmem>>, vector<8x1xf32>,
    return
  }
}

</mosaic_0001>

<llo_original>
// kernel: bandit_forward.3
$region0: #{bandit_forward.3}
  #allocation0 [shape = 'u32[]', space=smem, size = 0x4, offset = 0x4, fixed_abs, tag = 'smem constant byte address 0x4 - core index']
  #allocation1 [shape = 'u32[144,128]{1,0:T(1,128)}', space=vmem, size = 0x12000, scoped, tag = 'internal scratch']
  %s0 = inlined_call_operand.vmem [shape: f32[1,8], index: 0, kind: input, shape index: {}]
  %s1 = inlined_call_operand.vmem [shape: f32[4,6], index: 1, kind: input, shape index: {}]
  %s2 = inlined_call_operand.vmem [shape: f32[8], index: 2, kind: input, shape index: {}]
  %s3 = inlined_call_operand.vmem [shape: f32[8,128], index: 3, kind: output, shape index: {}]
  %s4 = sld [smem:[#allocation0]]
  $region26: #{bandit_forward.3} parent=0
    _
  %s6 = ssub.s32 1, %s4
  %s7 = scalar_select 0, %s6, %s4
  $region1: #{bandit_forward.3} parent=0
    #allocation2 [shape = 'u8[512]{0}', space=smem, size = 0x200, scoped, tag = 'input window, operand 2, single buffered']
    #allocation3 [shape = 's32[1]{0}', space=sflag, size = 0x4, scoped, tag = 'scoped memory for bandit_forward.3']
    %8 = vsyncpa [#allocation3], 0
    // Predicated region
    $region2: #{bandit_forward.3} parent=1 // pred_check
      _
    $region3: #{bandit_forward.3} parent=1 // pred_check_branch
      %10 = sbr.rel (0) target = $region5
    $region4: #{bandit_forward.3} parent=1 // pred_region
      _
    $region5: #{bandit_forward.3} parent=1 // pred_fallthru
      _
    // Predicated region
    $region6: #{bandit_forward.3} parent=1 // pred_check
      _
    $region7: #{bandit_forward.3} parent=1 // pred_check_branch
      %12 = sbr.rel (0) target = $region9
    $region8: #{bandit_forward.3} parent=1 // pred_region
      _
    $region9: #{bandit_forward.3} parent=1 // pred_fallthru
      _
    // Predicated region
    $region10: #{bandit_forward.3} parent=1 // pred_check
      _
    $region11: #{bandit_forward.3} parent=1 // pred_check_branch
      %14 = sbr.rel (0) target = $region13
    $region12: #{bandit_forward.3} parent=1 // pred_region
      %s16 = ssub.s32 16, 16
      %17 = vsyncadd [#allocation3], %s16
      %s19 = sshll.u32 %s2, 4
      %s20 = int_to_ptr.vmem [resolvable:$true] %s19
      %22 = dma.vmem_to_smem %s20, 16, [#allocation2], [#allocation3]
    $region13: #{bandit_forward.3} parent=1 // pred_fallthru
      _
    // Predicated region
    $region14: #{bandit_forward.3} parent=1 // pred_check
      _
    $region15: #{bandit_forward.3} parent=1 // pred_check_branch
      %24 = sbr.rel (0) target = $region17
    $region16: #{bandit_forward.3} parent=1 // pred_region
      %25 = dma.done [#allocation3], 16
    $region17: #{bandit_forward.3} parent=1 // pred_fallthru
      _
    %26 = sfence
    %v27 = vld [vmem:[%s0] sm:$0x1]
    %v28 = vlaneseq
    %v29 = vand.u32 %v28, 127
    %v30 = vcvt.s32.f32 %v29
    %v31 = vlaneseq
    %v32 = vshrl.u32 %v31, 7
    %v33 = vcvt.s32.f32 %v32
    %v34 = vmul.u32 %v32, 6
    %vm35 = vcmp.ge.s32.totalorder %v29, %v34
    %v36 = vadd.s32 %v34, 6
    %vm37 = vcmp.lt.s32.totalorder %v29, %v36
    %vm38 = vmand %vm35, %vm37
    %v39 = vadd.s32 %v32, 6
    %v40 = vadd.s32 %v32, 12
    %v41 = vadd.s32 %v32, 18
    %v42 = vadd.s32 %v32, 24
    %v43 = vadd.s32 %v32, 30
    %vm44 = vcmp.eq.s32.totalorder %v29, %v32
    %vm45 = vcmp.eq.s32.totalorder %v29, %v39
    %vm46 = vmor %vm44, %vm45
    %vm47 = vcmp.eq.s32.totalorder %v29, %v40
    %vm48 = vmor %vm46, %vm47
    %vm49 = vcmp.eq.s32.totalorder %v29, %v41
    %vm50 = vmor %vm48, %vm49
    %vm51 = vcmp.eq.s32.totalorder %v29, %v42
    %vm52 = vmor %vm50, %vm51
    %vm53 = vcmp.eq.s32.totalorder %v29, %v43
    %vm54 = vmor %vm52, %vm53
    %vm55 = vcmp.eq.s32.totalorder %v32, %v29
    %vm56 = vcmp.eq.s32.totalorder %v29, 0
    %vm57 = vcmp.eq.s32.totalorder %v29, 7
    %vm58 = vmor %vm56, %vm57
    %vm59 = vcmp.eq.s32.totalorder %v29, 14
    %vm60 = vmor %vm58, %vm59
    %vm61 = vcmp.eq.s32.totalorder %v29, 21
    %vm62 = vmor %vm60, %vm61
    %vm63 = vcmp.eq.s32.totalorder %v29, 28
    %vm64 = vmor %vm62, %vm63
    %vm65 = vcmp.eq.s32.totalorder %v29, 35
    %vm66 = vmor %vm64, %vm65
    %v67 = vsel %vm66, 1, 0
    %v68 = vcvt.s32.f32 %v67
    %vm69 = vcmp.eq.f32.partialorder 0.0, 0.0
    %v70 = vsel %vm69, 1.0, 0.0
    %v71 = vadd.f32 %v70, 0.0
    %vm72 = vcmp.ge.f32.partialorder %v71, %v71
    %v73 = vsel %vm72, %v30, 8.0
    %vm74 = vcmask 64512
    %v75 = vsel %vm74, %v73, inf
    %76 = vmin.xlane.f32.xlu0 %v75
    %v77 = vpop.xlane.xlu0 %76
    %vm78 = vcmp.eq.f32.partialorder %v30, %v77
    %v79 = vsel %vm78, %v27, 0.0
    %vm80 = vcmask 57344
    %v81 = vsel %vm80, %v79, 0.0
    %82 = vadd.xlane.f32.xlu0 %v81
    %v83 = vpop.xlane.xlu0 %82
    %s84 = sld [smem:[#allocation2]]
    %v85 = vstv %s84
    %vm86 = vcmp.lt.f32.partialorder %v85, %v83
    %v87 = vsel %vm86, 1, 0
    %v88 = vcvt.s32.f32 %v87
    %v89 = vadd.f32 %v88, 0.0
    %90 = vadd.xlane.f32.xlu0 0.0
    %v91 = vpop.xlane.xlu0 %90
    %v92 = vmul.f32 %v91, %v91
    %v93 = vadd.f32 %v92, %v88
    %v94 = vadd.f32 %v91, 1.0
    %v95 = vrcp.pop %v94
    %v96 = vmul.f32 %v93, %v95
    %v97 = vsel %vm78, %v96, 0.0
    %v98 = vsel %vm78, %v94, 0.0
    %v99 = vld [vmem:[%s1] sm:$0x1]
    %v100 = vlaneseq
    %v101 = vshrl.u32 %v100, 7
    %v102 = vsub.s32 0, %v101
    %v103 = vrot.slane %v99, %v102
    %v104 = vsel %vm55, %v103, 0.0
    %vm105 = vcmask 46080
    %v106 = vsel %vm105, %v104, 0.0
    %107 = vadd.xlane.f32.xlu0 %v106
    %v108 = vpop.xlane.xlu0 %107
    %v109 = vsel %vm54, %v108, 0.0
    %vm110 = vcmask 291840
    %v111 = vsel %vm110, %v109, 0.0
    %v112 = vrot.slane %v111, 4
    %v113 = vadd.f32 %v111, %v112
    %v114 = vrot.slane %v113, 2
    %v115 = vadd.f32 %v113, %v114
    %v116 = vrot.slane %v115, 1
    %v117 = vadd.f32 %v115, %v116
    %v118 = vsel %vm38, %v108, 0.0
    %v119 = vsel %vm110, %v118, 0.0
    %v120 = vrot.slane %v119, 4
    %v121 = vadd.f32 %v119, %v120
    %v122 = vrot.slane %v121, 2
    %v123 = vadd.f32 %v121, %v122
    %v124 = vrot.slane %v123, 1
    %v125 = vadd.f32 %v123, %v124
    %v126 = vmul.f32 %v125, %v117
    %v127 = vmul.f32 %v103, 0.0
    %vm128 = vcmask 48128
    %v129 = vsel %vm128, %v127, 0.0
    %130 = vadd.xlane.f32.xlu0 %v129
    %v131 = vpop.xlane.xlu0 %130
    %v132 = vmul.f32 %v68, %v126
    %vm133 = vcmask 293888
    %v134 = vsel %vm133, %v132, 0.0
    %135 = vadd.xlane.f32.xlu0 %v134
    %v136 = vpop.xlane.xlu0 %135
    %v137 = vmax.f32 %v136, 0.0
    %v138 = vrsqrt.pop %v137
    %v139 = vmul.f32 %v137, %v138
    %vm140 = vcmp.eq.f32.partialorder %v137, inf
    %v141 = vsel %vm140, %v137, %v139
    %vm142 = vcmp.eq.f32.partialorder %v137, 0.0
    %v143 = vand.u32 %v137, 2147483648
    %v144 = vsel %vm142, %v143, %v141
    %v145 = vmul.f32 %v144, 0.25
    %v146 = vadd.f32 %v131, %v145
    %vm147 = vcmp.ge.f32.partialorder %v146, %v146
    %v148 = vsel %vm147, %v33, 8.0
    %v149 = vrot.slane %v148, 4
    %v150 = vmin.f32 %v148, %v149
    %v151 = vrot.slane %v150, 2
    %v152 = vmin.f32 %v150, %v151
    %v153 = vrot.slane %v152, 1
    %v154 = vmin.f32 %v152, %v153
    %vm155 = vcmp.eq.f32.partialorder %v30, %v154
    %vm156 = vcmp.eq.f32.partialorder %v33, %v154
    %v157 = vsel %vm155, %v27, 0.0
    %v158 = vsel %vm80, %v157, 0.0
    %159 = vadd.xlane.f32.xlu0 %v158
    %v160 = vpop.xlane.xlu0 %159
    %s161 = sld [smem:[#allocation2 + $0x4]]
    %v162 = vstv %s161
    %vm163 = vcmp.lt.f32.partialorder %v162, %v160
    %v164 = vsel %vm163, 1, 0
    %v165 = vcvt.s32.f32 %v164
    %vm166 = vcmp.eq.f32.partialorder %v165, 1.0
    %v167 = vsel %vm166, 0.6, -16.0
    %v168 = vsel %vm156, 1, 0
    %vm169 = vcmp.eq.s32.totalorder %v168, 1
    %v170 = vsel %vm169, %v68, 0.0
    %v171 = vsel %vm133, %v170, 0.0
    %v172 = vrot.slane %v171, 4
    %v173 = vadd.f32 %v171, %v172
    %v174 = vrot.slane %v173, 2
    %v175 = vadd.f32 %v173, %v174
    %v176 = vrot.slane %v175, 1
    %v177 = vadd.f32 %v175, %v176
    %v178 = vsel %vm156, %v137, 0.0
    %v179 = vrot.slane %v178, 4
    %v180 = vadd.f32 %v178, %v179
    %v181 = vrot.slane %v180, 2
    %v182 = vadd.f32 %v180, %v181
    %v183 = vrot.slane %v182, 1
    %v184 = vadd.f32 %v182, %v183
    %v185 = vmul.f32 %v167, %v99
    %v186 = vadd.f32 0.0, %v185
    %v187 = vmul.f32 %v177, %v117
    %v188 = vsel %vm38, %v187, 0.0
    %v189 = vsel %vm110, %v188, 0.0
    %190 = vadd.xlane.f32.xlu0 %v189
    %v191 = vpop.xlane.xlu0 %190
    %v192 = vsel %vm38, %v191, 0.0
    %v193 = vsel %vm110, %v192, 0.0
    %v194 = vrot.slane %v193, 4
    %v195 = vadd.f32 %v193, %v194
    %v196 = vrot.slane %v195, 2
    %v197 = vadd.f32 %v195, %v196
    %v198 = vrot.slane %v197, 1
    %v199 = vadd.f32 %v197, %v198
    %v200 = vsel %vm54, %v191, 0.0
    %v201 = vsel %vm110, %v200, 0.0
    %v202 = vrot.slane %v201, 4
    %v203 = vadd.f32 %v201, %v202
    %v204 = vrot.slane %v203, 2
    %v205 = vadd.f32 %v203, %v204
    %v206 = vrot.slane %v205, 1
    %v207 = vadd.f32 %v205, %v206
    %v208 = vmul.f32 %v199, %v207
    %v209 = vadd.f32 %v184, 1.0
    %v210 = vrcp.pop %v209
    %v211 = vmul.f32 %v208, %v210
    %v212 = vsub.f32 %v177, %v211
    %v213 = vlaneseq
    %v214 = vshrl.u32 %v213, 7
    %v215 = vsub.s32 0, %v214
    %v216 = vrot.slane %v186, %v215
    %v217 = vsel %vm55, %v216, 0.0
    %v218 = vsel %vm105, %v217, 0.0
    %219 = vadd.xlane.f32.xlu0 %v218
    %v220 = vpop.xlane.xlu0 %219
    %v221 = vsel %vm54, %v220, 0.0
    %v222 = vsel %vm110, %v221, 0.0
    %v223 = vrot.slane %v222, 4
    %v224 = vadd.f32 %v222, %v223
    %v225 = vrot.slane %v224, 2
    %v226 = vadd.f32 %v224, %v225
    %v227 = vrot.slane %v226, 1
    %v228 = vadd.f32 %v226, %v227
    %v229 = vmul.f32 %v212, %v228
    %v230 = vsel %vm38, %v229, 0.0
    %v231 = vsel %vm110, %v230, 0.0
    %232 = vadd.xlane.f32.xlu0 %v231
    %v233 = vpop.xlane.xlu0 %232
    %v234 = vsel %vm55, %v233, 0.0
    %v235 = vsel %vm105, %v234, 0.0
    %v236 = vrot.slane %v235, 4
    %v237 = vadd.f32 %v235, %v236
    %v238 = vrot.slane %v237, 2
    %v239 = vadd.f32 %v237, %v238
    %v240 = vrot.slane %v239, 1
    %v241 = vadd.f32 %v239, %v240
    %v242 = vadd.f32 %v68, %v126
    %v243 = vsel %vm169, %v242, %v68
    %v244 = vsel %vm169, %v212, %v68
    %v245 = vsel %vm169, %v216, 0.0
    %v246 = vsel %vm169, %v241, 0.0
    %v247 = vadd.f32 %v165, 0.0
    %v248 = vadd.f32 %v92, %v165
    %v249 = vmul.f32 %v248, %v95
    %v250 = vsel %vm155, %v249, 0.0
    %v251 = vsel %vm155, %v94, 0.0
    %vm252 = vcmp.eq.f32.partialorder %v98, 0.0
    %v253 = vadd.f32 %v98, 1e-08
    %v254 = vrcp.pop %v253
    %v255 = vmul.f32 0.60206, %v254
    %v256 = vrsqrt.pop %v255
    %v257 = vmul.f32 %v255, %v256
    %vm258 = vcmp.eq.f32.partialorder %v255, inf
    %v259 = vsel %vm258, %v255, %v257
    %vm260 = vcmp.eq.f32.partialorder %v255, 0.0
    %v261 = vand.u32 %v255, 2147483648
    %v262 = vsel %vm260, %v261, %v259
    %v263 = vsel %vm252, 1.0, %v262
    %v264 = vadd.f32 %v97, %v263
    %v265 = vsel %vm80, %v264, -inf
    %266 = vmax.xlane.f32.xlu0 %v265
    %v267 = vpop.xlane.xlu0 %266
    %vm268 = vcmp.ge.f32.partialorder %v264, %v267
    %v269 = vsel %vm268, %v30, 8.0
    %v270 = vsel %vm80, %v269, inf
    %271 = vmin.xlane.f32.xlu0 %v270
    %v272 = vpop.xlane.xlu0 %271
    %vm273 = vcmp.eq.f32.partialorder %v30, %v272
    %v274 = vsel %vm273, %v27, 0.0
    %v275 = vsel %vm80, %v274, 0.0
    %276 = vadd.xlane.f32.xlu0 %v275
    %v277 = vpop.xlane.xlu0 %276
    %s278 = sld [smem:[#allocation2 + $0x1]]
    %v279 = vstv %s278
    %vm280 = vcmp.lt.f32.partialorder %v279, %v277
    %v281 = vsel %vm280, 1, 0
    %v282 = vcvt.s32.f32 %v281
    %v283 = vadd.f32 %v89, %v282
    %v284 = vsel %vm273, %v98, 0.0
    %v285 = vsel %vm80, %v284, 0.0
    %286 = vadd.xlane.f32.xlu0 %v285
    %v287 = vpop.xlane.xlu0 %286
    %v288 = vsel %vm273, %v97, 0.0
    %v289 = vsel %vm80, %v288, 0.0
    %290 = vadd.xlane.f32.xlu0 %v289
    %v291 = vpop.xlane.xlu0 %290
    %v292 = vmul.f32 %v287, %v291
    %v293 = vadd.f32 %v292, %v282
    %v294 = vadd.f32 %v287, 1.0
    %v295 = vrcp.pop %v294
    %v296 = vmul.f32 %v293, %v295
    %v297 = vsel %vm273, %v296, %v97
    %v298 = vsel %vm273, %v294, %v98
    %v299 = vld [vmem:[%s1 + $0x1] sm:$0x1]
    %v300 = vlaneseq
    %v301 = vshrl.u32 %v300, 7
    %v302 = vsub.s32 0, %v301
    %v303 = vrot.slane %v299, %v302
    %v304 = vsel %vm55, %v303, 0.0
    %v305 = vsel %vm105, %v304, 0.0
    %306 = vadd.xlane.f32.xlu0 %v305
    %v307 = vpop.xlane.xlu0 %306
    %v308 = vsel %vm54, %v307, 0.0
    %v309 = vsel %vm110, %v308, 0.0
    %v310 = vrot.slane %v309, 4
    %v311 = vadd.f32 %v309, %v310
    %v312 = vrot.slane %v311, 2
    %v313 = vadd.f32 %v311, %v312
    %v314 = vrot.slane %v313, 1
    %v315 = vadd.f32 %v313, %v314
    %v316 = vsel %vm38, %v307, 0.0
    %v317 = vsel %vm110, %v316, 0.0
    %v318 = vrot.slane %v317, 4
    %v319 = vadd.f32 %v317, %v318
    %v320 = vrot.slane %v319, 2
    %v321 = vadd.f32 %v319, %v320
    %v322 = vrot.slane %v321, 1
    %v323 = vadd.f32 %v321, %v322
    %v324 = vmul.f32 %v323, %v315
    %v325 = vmul.f32 %v246, %v303
    %v326 = vsel %vm128, %v325, 0.0
    %327 = vadd.xlane.f32.xlu0 %v326
    %v328 = vpop.xlane.xlu0 %327
    %v329 = vmul.f32 %v244, %v324
    %v330 = vsel %vm133, %v329, 0.0
    %331 = vadd.xlane.f32.xlu0 %v330
    %v332 = vpop.xlane.xlu0 %331
    %v333 = vmax.f32 %v332, 0.0
    %v334 = vrsqrt.pop %v333
    %v335 = vmul.f32 %v333, %v334
    %vm336 = vcmp.eq.f32.partialorder %v333, inf
    %v337 = vsel %vm336, %v333, %v335
    %vm338 = vcmp.eq.f32.partialorder %v333, 0.0
    %v339 = vand.u32 %v333, 2147483648
    %v340 = vsel %vm338, %v339, %v337
    %v341 = vmul.f32 %v340, 0.25
    %v342 = vadd.f32 %v328, %v341
    %v343 = vrot.slane %v342, 4
    %v344 = vmax.f32 %v342, %v343
    %v345 = vrot.slane %v344, 2
    %v346 = vmax.f32 %v344, %v345
    %v347 = vrot.slane %v346, 1
    %v348 = vmax.f32 %v346, %v347
    %vm349 = vcmp.ge.f32.partialorder %v342, %v348
    %v350 = vsel %vm349, %v33, 8.0
    %v351 = vrot.slane %v350, 4
    %v352 = vmin.f32 %v350, %v351
    %v353 = vrot.slane %v352, 2
    %v354 = vmin.f32 %v352, %v353
    %v355 = vrot.slane %v354, 1
    %v356 = vmin.f32 %v354, %v355
    %vm357 = vcmp.eq.f32.partialorder %v30, %v356
    %vm358 = vcmp.eq.f32.partialorder %v33, %v356
    %v359 = vsel %vm357, %v27, 0.0
    %v360 = vsel %vm80, %v359, 0.0
    %361 = vadd.xlane.f32.xlu0 %v360
    %v362 = vpop.xlane.xlu0 %361
    %s363 = sld [smem:[#allocation2 + $0x5]]
    %v364 = vstv %s363
    %vm365 = vcmp.lt.f32.partialorder %v364, %v362
    %v366 = vsel %vm365, 1, 0
    %v367 = vcvt.s32.f32 %v366
    %vm368 = vcmp.eq.f32.partialorder %v367, 1.0
    %v369 = vsel %vm368, 0.6, -16.0
    %v370 = vsel %vm358, 1, 0
    %vm371 = vcmp.eq.s32.totalorder %v370, 1
    %v372 = vsel %vm371, %v244, 0.0
    %v373 = vsel %vm133, %v372, 0.0
    %v374 = vrot.slane %v373, 4
    %v375 = vadd.f32 %v373, %v374
    %v376 = vrot.slane %v375, 2
    %v377 = vadd.f32 %v375, %v376
    %v378 = vrot.slane %v377, 1
    %v379 = vadd.f32 %v377, %v378
    %v380 = vsel %vm371, %v245, 0.0
    %v381 = vsel %vm128, %v380, 0.0
    %v382 = vrot.slane %v381, 4
    %v383 = vadd.f32 %v381, %v382
    %v384 = vrot.slane %v383, 2
    %v385 = vadd.f32 %v383, %v384
    %v386 = vrot.slane %v385, 1
    %v387 = vadd.f32 %v385, %v386
    %v388 = vsel %vm358, %v333, 0.0
    %v389 = vrot.slane %v388, 4
    %v390 = vadd.f32 %v388, %v389
    %v391 = vrot.slane %v390, 2
    %v392 = vadd.f32 %v390, %v391
    %v393 = vrot.slane %v392, 1
    %v394 = vadd.f32 %v392, %v393
    %v395 = vmul.f32 %v369, %v299
    %v396 = vadd.f32 %v387, %v395
    %v397 = vmul.f32 %v379, %v315
    %v398 = vsel %vm38, %v397, 0.0
    %v399 = vsel %vm110, %v398, 0.0
    %400 = vadd.xlane.f32.xlu0 %v399
    %v401 = vpop.xlane.xlu0 %400
    %v402 = vsel %vm38, %v401, 0.0
    %v403 = vsel %vm110, %v402, 0.0
    %v404 = vrot.slane %v403, 4
    %v405 = vadd.f32 %v403, %v404
    %v406 = vrot.slane %v405, 2
    %v407 = vadd.f32 %v405, %v406
    %v408 = vrot.slane %v407, 1
    %v409 = vadd.f32 %v407, %v408
    %v410 = vsel %vm54, %v401, 0.0
    %v411 = vsel %vm110, %v410, 0.0
    %v412 = vrot.slane %v411, 4
    %v413 = vadd.f32 %v411, %v412
    %v414 = vrot.slane %v413, 2
    %v415 = vadd.f32 %v413, %v414
    %v416 = vrot.slane %v415, 1
    %v417 = vadd.f32 %v415, %v416
    %v418 = vmul.f32 %v409, %v417
    %v419 = vadd.f32 %v394, 1.0
    %v420 = vrcp.pop %v419
    %v421 = vmul.f32 %v418, %v420
    %v422 = vsub.f32 %v379, %v421
    %v423 = vlaneseq
    %v424 = vshrl.u32 %v423, 7
    %v425 = vsub.s32 0, %v424
    %v426 = vrot.slane %v396, %v425
    %v427 = vsel %vm55, %v426, 0.0
    %v428 = vsel %vm105, %v427, 0.0
    %429 = vadd.xlane.f32.xlu0 %v428
    %v430 = vpop.xlane.xlu0 %429
    %v431 = vsel %vm54, %v430, 0.0
    %v432 = vsel %vm110, %v431, 0.0
    %v433 = vrot.slane %v432, 4
    %v434 = vadd.f32 %v432, %v433
    %v435 = vrot.slane %v434, 2
    %v436 = vadd.f32 %v434, %v435
    %v437 = vrot.slane %v436, 1
    %v438 = vadd.f32 %v436, %v437
    %v439 = vmul.f32 %v422, %v438
    %v440 = vsel %vm38, %v439, 0.0
    %v441 = vsel %vm110, %v440, 0.0
    %442 = vadd.xlane.f32.xlu0 %v441
    %v443 = vpop.xlane.xlu0 %442
    %v444 = vsel %vm55, %v443, 0.0
    %v445 = vsel %vm105, %v444, 0.0
    %v446 = vrot.slane %v445, 4
    %v447 = vadd.f32 %v445, %v446
    %v448 = vrot.slane %v447, 2
    %v449 = vadd.f32 %v447, %v448
    %v450 = vrot.slane %v449, 1
    %v451 = vadd.f32 %v449, %v450
    %v452 = vadd.f32 %v243, %v324
    %v453 = vsel %vm371, %v452, %v243
    %v454 = vsel %vm371, %v422, %v244
    %v455 = vsel %vm371, %v426, %v245
    %v456 = vsel %vm371, %v451, %v246
    %v457 = vadd.f32 %v247, %v367
    %v458 = vsel %vm357, %v251, 0.0
    %v459 = vsel %vm74, %v458, 0.0
    %460 = vadd.xlane.f32.xlu0 %v459
    %v461 = vpop.xlane.xlu0 %460
    %v462 = vsel %vm357, %v250, 0.0
    %v463 = vsel %vm80, %v462, 0.0
    %464 = vadd.xlane.f32.xlu0 %v463
    %v465 = vpop.xlane.xlu0 %464
    %v466 = vmul.f32 %v461, %v465
    %v467 = vadd.f32 %v466, %v367
    %v468 = vadd.f32 %v461, 1.0
    %v469 = vrcp.pop %v468
    %v470 = vmul.f32 %v467, %v469
    %v471 = vsel %vm357, %v470, %v250
    %v472 = vsel %vm357, %v468, %v251
    %vm473 = vcmp.eq.f32.partialorder %v298, 0.0
    %v474 = vadd.f32 %v298, 1e-08
    %v475 = vrcp.pop %v474
    %v476 = vmul.f32 0.9542425, %v475
    %v477 = vrsqrt.pop %v476
    %v478 = vmul.f32 %v476, %v477
    %vm479 = vcmp.eq.f32.partialorder %v476, inf
    %v480 = vsel %vm479, %v476, %v478
    %vm481 = vcmp.eq.f32.partialorder %v476, 0.0
    %v482 = vand.u32 %v476, 2147483648
    %v483 = vsel %vm481, %v482, %v480
    %v484 = vsel %vm473, 1.0, %v483
    %v485 = vadd.f32 %v297, %v484
    %v486 = vsel %vm80, %v485, -inf
    %487 = vmax.xlane.f32.xlu0 %v486
    %v488 = vpop.xlane.xlu0 %487
    %vm489 = vcmp.ge.f32.partialorder %v485, %v488
    %v490 = vsel %vm489, %v30, 8.0
    %v491 = vsel %vm80, %v490, inf
    %492 = vmin.xlane.f32.xlu0 %v491
    %v493 = vpop.xlane.xlu0 %492
    %vm494 = vcmp.eq.f32.partialorder %v30, %v493
    %v495 = vsel %vm494, %v27, 0.0
    %v496 = vsel %vm80, %v495, 0.0
    %497 = vadd.xlane.f32.xlu0 %v496
    %v498 = vpop.xlane.xlu0 %497
    %s499 = sld [smem:[#allocation2 + $0x2]]
    %v500 = vstv %s499
    %vm501 = vcmp.lt.f32.partialorder %v500, %v498
    %v502 = vsel %vm501, 1, 0
    %v503 = vcvt.s32.f32 %v502
    %v504 = vadd.f32 %v283, %v503
    %v505 = vsel %vm494, %v298, 0.0
    %v506 = vsel %vm80, %v505, 0.0
    %507 = vadd.xlane.f32.xlu0 %v506
    %v508 = vpop.xlane.xlu0 %507
    %v509 = vsel %vm494, %v297, 0.0
    %v510 = vsel %vm80, %v509, 0.0
    %511 = vadd.xlane.f32.xlu0 %v510
    %v512 = vpop.xlane.xlu0 %511
    %v513 = vmul.f32 %v508, %v512
    %v514 = vadd.f32 %v513, %v503
    %v515 = vadd.f32 %v508, 1.0
    %v516 = vrcp.pop %v515
    %v517 = vmul.f32 %v514, %v516
    %v518 = vsel %vm494, %v517, %v297
    %v519 = vsel %vm494, %v515, %v298
    %v520 = vld [vmem:[%s1 + $0x2] sm:$0x1]
    %v521 = vlaneseq
    %v522 = vshrl.u32 %v521, 7
    %v523 = vsub.s32 0, %v522
    %v524 = vrot.slane %v520, %v523
    %v525 = vsel %vm55, %v524, 0.0
    %v526 = vsel %vm105, %v525, 0.0
    %527 = vadd.xlane.f32.xlu0 %v526
    %v528 = vpop.xlane.xlu0 %527
    %v529 = vsel %vm54, %v528, 0.0
    %v530 = vsel %vm110, %v529, 0.0
    %v531 = vrot.slane %v530, 4
    %v532 = vadd.f32 %v530, %v531
    %v533 = vrot.slane %v532, 2
    %v534 = vadd.f32 %v532, %v533
    %v535 = vrot.slane %v534, 1
    %v536 = vadd.f32 %v534, %v535
    %v537 = vsel %vm38, %v528, 0.0
    %v538 = vsel %vm110, %v537, 0.0
    %v539 = vrot.slane %v538, 4
    %v540 = vadd.f32 %v538, %v539
    %v541 = vrot.slane %v540, 2
    %v542 = vadd.f32 %v540, %v541
    %v543 = vrot.slane %v542, 1
    %v544 = vadd.f32 %v542, %v543
    %v545 = vmul.f32 %v544, %v536
    %v546 = vmul.f32 %v456, %v524
    %v547 = vsel %vm128, %v546, 0.0
    %548 = vadd.xlane.f32.xlu0 %v547
    %v549 = vpop.xlane.xlu0 %548
    %v550 = vmul.f32 %v454, %v545
    %v551 = vsel %vm133, %v550, 0.0
    %552 = vadd.xlane.f32.xlu0 %v551
    %v553 = vpop.xlane.xlu0 %552
    %v554 = vmax.f32 %v553, 0.0
    %v555 = vrsqrt.pop %v554
    %v556 = vmul.f32 %v554, %v555
    %vm557 = vcmp.eq.f32.partialorder %v554, inf
    %v558 = vsel %vm557, %v554, %v556
    %vm559 = vcmp.eq.f32.partialorder %v554, 0.0
    %v560 = vand.u32 %v554, 2147483648
    %v561 = vsel %vm559, %v560, %v558
    %v562 = vmul.f32 %v561, 0.25
    %v563 = vadd.f32 %v549, %v562
    %v564 = vrot.slane %v563, 4
    %v565 = vmax.f32 %v563, %v564
    %v566 = vrot.slane %v565, 2
    %v567 = vmax.f32 %v565, %v566
    %v568 = vrot.slane %v567, 1
    %v569 = vmax.f32 %v567, %v568
    %vm570 = vcmp.ge.f32.partialorder %v563, %v569
    %v571 = vsel %vm570, %v33, 8.0
    %v572 = vrot.slane %v571, 4
    %v573 = vmin.f32 %v571, %v572
    %v574 = vrot.slane %v573, 2
    %v575 = vmin.f32 %v573, %v574
    %v576 = vrot.slane %v575, 1
    %v577 = vmin.f32 %v575, %v576
    %vm578 = vcmp.eq.f32.partialorder %v30, %v577
    %vm579 = vcmp.eq.f32.partialorder %v33, %v577
    %v580 = vsel %vm578, %v27, 0.0
    %v581 = vsel %vm80, %v580, 0.0
    %582 = vadd.xlane.f32.xlu0 %v581
    %v583 = vpop.xlane.xlu0 %582
    %s584 = sld [smem:[#allocation2 + $0x6]]
    %v585 = vstv %s584
    %vm586 = vcmp.lt.f32.partialorder %v585, %v583
    %v587 = vsel %vm586, 1, 0
    %v588 = vcvt.s32.f32 %v587
    %vm589 = vcmp.eq.f32.partialorder %v588, 1.0
    %v590 = vsel %vm589, 0.6, -16.0
    %v591 = vsel %vm579, 1, 0
    %vm592 = vcmp.eq.s32.totalorder %v591, 1
    %v593 = vsel %vm592, %v454, 0.0
    %v594 = vsel %vm133, %v593, 0.0
    %v595 = vrot.slane %v594, 4
    %v596 = vadd.f32 %v594, %v595
    %v597 = vrot.slane %v596, 2
    %v598 = vadd.f32 %v596, %v597
    %v599 = vrot.slane %v598, 1
    %v600 = vadd.f32 %v598, %v599
    %v601 = vsel %vm592, %v455, 0.0
    %v602 = vsel %vm128, %v601, 0.0
    %v603 = vrot.slane %v602, 4
    %v604 = vadd.f32 %v602, %v603
    %v605 = vrot.slane %v604, 2
    %v606 = vadd.f32 %v604, %v605
    %v607 = vrot.slane %v606, 1
    %v608 = vadd.f32 %v606, %v607
    %v609 = vsel %vm579, %v554, 0.0
    %v610 = vrot.slane %v609, 4
    %v611 = vadd.f32 %v609, %v610
    %v612 = vrot.slane %v611, 2
    %v613 = vadd.f32 %v611, %v612
    %v614 = vrot.slane %v613, 1
    %v615 = vadd.f32 %v613, %v614
    %v616 = vmul.f32 %v590, %v520
    %v617 = vadd.f32 %v608, %v616
    %v618 = vmul.f32 %v600, %v536
    %v619 = vsel %vm38, %v618, 0.0
    %v620 = vsel %vm110, %v619, 0.0
    %621 = vadd.xlane.f32.xlu0 %v620
    %v622 = vpop.xlane.xlu0 %621
    %v623 = vsel %vm38, %v622, 0.0
    %v624 = vsel %vm110, %v623, 0.0
    %v625 = vrot.slane %v624, 4
    %v626 = vadd.f32 %v624, %v625
    %v627 = vrot.slane %v626, 2
    %v628 = vadd.f32 %v626, %v627
    %v629 = vrot.slane %v628, 1
    %v630 = vadd.f32 %v628, %v629
    %v631 = vsel %vm54, %v622, 0.0
    %v632 = vsel %vm110, %v631, 0.0
    %v633 = vrot.slane %v632, 4
    %v634 = vadd.f32 %v632, %v633
    %v635 = vrot.slane %v634, 2
    %v636 = vadd.f32 %v634, %v635
    %v637 = vrot.slane %v636, 1
    %v638 = vadd.f32 %v636, %v637
    %v639 = vmul.f32 %v630, %v638
    %v640 = vadd.f32 %v615, 1.0
    %v641 = vrcp.pop %v640
    %v642 = vmul.f32 %v639, %v641
    %v643 = vsub.f32 %v600, %v642
    %v644 = vlaneseq
    %v645 = vshrl.u32 %v644, 7
    %v646 = vsub.s32 0, %v645
    %v647 = vrot.slane %v617, %v646
    %v648 = vsel %vm55, %v647, 0.0
    %v649 = vsel %vm105, %v648, 0.0
    %650 = vadd.xlane.f32.xlu0 %v649
    %v651 = vpop.xlane.xlu0 %650
    %v652 = vsel %vm54, %v651, 0.0
    %v653 = vsel %vm110, %v652, 0.0
    %v654 = vrot.slane %v653, 4
    %v655 = vadd.f32 %v653, %v654
    %v656 = vrot.slane %v655, 2
    %v657 = vadd.f32 %v655, %v656
    %v658 = vrot.slane %v657, 1
    %v659 = vadd.f32 %v657, %v658
    %v660 = vmul.f32 %v643, %v659
    %v661 = vsel %vm38, %v660, 0.0
    %v662 = vsel %vm110, %v661, 0.0
    %663 = vadd.xlane.f32.xlu0 %v662
    %v664 = vpop.xlane.xlu0 %663
    %v665 = vsel %vm55, %v664, 0.0
    %v666 = vsel %vm105, %v665, 0.0
    %v667 = vrot.slane %v666, 4
    %v668 = vadd.f32 %v666, %v667
    %v669 = vrot.slane %v668, 2
    %v670 = vadd.f32 %v668, %v669
    %v671 = vrot.slane %v670, 1
    %v672 = vadd.f32 %v670, %v671
    %v673 = vadd.f32 %v453, %v545
    %v674 = vsel %vm592, %v673, %v453
    %v675 = vsel %vm592, %v643, %v454
    %v676 = vsel %vm592, %v647, %v455
    %v677 = vsel %vm592, %v672, %v456
    %v678 = vadd.f32 %v457, %v588
    %v679 = vsel %vm578, %v472, 0.0
    %v680 = vsel %vm74, %v679, 0.0
    %681 = vadd.xlane.f32.xlu0 %v680
    %v682 = vpop.xlane.xlu0 %681
    %v683 = vsel %vm578, %v471, 0.0
    %v684 = vsel %vm80, %v683, 0.0
    %685 = vadd.xlane.f32.xlu0 %v684
    %v686 = vpop.xlane.xlu0 %685
    %v687 = vmul.f32 %v682, %v686
    %v688 = vadd.f32 %v687, %v588
    %v689 = vadd.f32 %v682, 1.0
    %v690 = vrcp.pop %v689
    %v691 = vmul.f32 %v688, %v690
    %v692 = vsel %vm578, %v691, %v471
    %v693 = vsel %vm578, %v689, %v472
    %vm694 = vcmp.eq.f32.partialorder %v519, 0.0
    %v695 = vadd.f32 %v519, 1e-08
    %v696 = vrcp.pop %v695
    %v697 = vmul.f32 1.20412, %v696
    %v698 = vrsqrt.pop %v697
    %v699 = vmul.f32 %v697, %v698
    %vm700 = vcmp.eq.f32.partialorder %v697, inf
    %v701 = vsel %vm700, %v697, %v699
    %vm702 = vcmp.eq.f32.partialorder %v697, 0.0
    %v703 = vand.u32 %v697, 2147483648
    %v704 = vsel %vm702, %v703, %v701
    %v705 = vsel %vm694, 1.0, %v704
    %v706 = vadd.f32 %v518, %v705
    %v707 = vsel %vm80, %v706, -inf
    %708 = vmax.xlane.f32.xlu0 %v707
    %v709 = vpop.xlane.xlu0 %708
    %vm710 = vcmp.ge.f32.partialorder %v706, %v709
    %v711 = vsel %vm710, %v30, 8.0
    %v712 = vsel %vm80, %v711, inf
    %713 = vmin.xlane.f32.xlu0 %v712
    %v714 = vpop.xlane.xlu0 %713
    %vm715 = vcmp.eq.f32.partialorder %v30, %v714
    %v716 = vsel %vm715, %v27, 0.0
    %v717 = vsel %vm80, %v716, 0.0
    %718 = vadd.xlane.f32.xlu0 %v717
    %v719 = vpop.xlane.xlu0 %718
    %s720 = sld [smem:[#allocation2 + $0x3]]
    %v721 = vstv %s720
    %vm722 = vcmp.lt.f32.partialorder %v721, %v719
    %v723 = vsel %vm722, 1, 0
    %v724 = vcvt.s32.f32 %v723
    %v725 = vadd.f32 %v504, %v724
    %v726 = vsel %vm715, %v519, 0.0
    %v727 = vsel %vm80, %v726, 0.0
    %728 = vadd.xlane.f32.xlu0 %v727
    %v729 = vpop.xlane.xlu0 %728
    %v730 = vsel %vm715, %v518, 0.0
    %v731 = vsel %vm80, %v730, 0.0
    %732 = vadd.xlane.f32.xlu0 %v731
    %v733 = vpop.xlane.xlu0 %732
    %v734 = vmul.f32 %v729, %v733
    %v735 = vadd.f32 %v734, %v724
    %v736 = vadd.f32 %v729, 1.0
    %v737 = vrcp.pop %v736
    %v738 = vmul.f32 %v735, %v737
    %v739 = vsel %vm715, %v738, %v518
    %v740 = vsel %vm715, %v736, %v519
    %v741 = vld [vmem:[%s1 + $0x3] sm:$0x1]
    %v742 = vlaneseq
    %v743 = vshrl.u32 %v742, 7
    %v744 = vsub.s32 0, %v743
    %v745 = vrot.slane %v741, %v744
    %v746 = vsel %vm55, %v745, 0.0
    %v747 = vsel %vm105, %v746, 0.0
    %748 = vadd.xlane.f32.xlu0 %v747
    %v749 = vpop.xlane.xlu0 %748
    %v750 = vsel %vm54, %v749, 0.0
    %v751 = vsel %vm110, %v750, 0.0
    %v752 = vrot.slane %v751, 4
    %v753 = vadd.f32 %v751, %v752
    %v754 = vrot.slane %v753, 2
    %v755 = vadd.f32 %v753, %v754
    %v756 = vrot.slane %v755, 1
    %v757 = vadd.f32 %v755, %v756
    %v758 = vsel %vm38, %v749, 0.0
    %v759 = vsel %vm110, %v758, 0.0
    %v760 = vrot.slane %v759, 4
    %v761 = vadd.f32 %v759, %v760
    %v762 = vrot.slane %v761, 2
    %v763 = vadd.f32 %v761, %v762
    %v764 = vrot.slane %v763, 1
    %v765 = vadd.f32 %v763, %v764
    %v766 = vmul.f32 %v765, %v757
    %v767 = vmul.f32 %v677, %v745
    %v768 = vsel %vm128, %v767, 0.0
    %769 = vadd.xlane.f32.xlu0 %v768
    %v770 = vpop.xlane.xlu0 %769
    %v771 = vmul.f32 %v675, %v766
    %v772 = vsel %vm133, %v771, 0.0
    %773 = vadd.xlane.f32.xlu0 %v772
    %v774 = vpop.xlane.xlu0 %773
    %v775 = vmax.f32 %v774, 0.0
    %v776 = vrsqrt.pop %v775
    %v777 = vmul.f32 %v775, %v776
    %vm778 = vcmp.eq.f32.partialorder %v775, inf
    %v779 = vsel %vm778, %v775, %v777
    %vm780 = vcmp.eq.f32.partialorder %v775, 0.0
    %v781 = vand.u32 %v775, 2147483648
    %v782 = vsel %vm780, %v781, %v779
    %v783 = vmul.f32 %v782, 0.25
    %v784 = vadd.f32 %v770, %v783
    %v785 = vrot.slane %v784, 4
    %v786 = vmax.f32 %v784, %v785
    %v787 = vrot.slane %v786, 2
    %v788 = vmax.f32 %v786, %v787
    %v789 = vrot.slane %v788, 1
    %v790 = vmax.f32 %v788, %v789
    %vm791 = vcmp.ge.f32.partialorder %v784, %v790
    %v792 = vsel %vm791, %v33, 8.0
    %v793 = vrot.slane %v792, 4
    %v794 = vmin.f32 %v792, %v793
    %v795 = vrot.slane %v794, 2
    %v796 = vmin.f32 %v794, %v795
    %v797 = vrot.slane %v796, 1
    %v798 = vmin.f32 %v796, %v797
    %vm799 = vcmp.eq.f32.partialorder %v30, %v798
    %vm800 = vcmp.eq.f32.partialorder %v33, %v798
    %v801 = vsel %vm799, %v27, 0.0
    %v802 = vsel %vm80, %v801, 0.0
    %803 = vadd.xlane.f32.xlu0 %v802
    %v804 = vpop.xlane.xlu0 %803
    %s805 = sld [smem:[#allocation2 + $0x7]]
    %v806 = vstv %s805
    %vm807 = vcmp.lt.f32.partialorder %v806, %v804
    %v808 = vsel %vm807, 1, 0
    %v809 = vcvt.s32.f32 %v808
    %vm810 = vcmp.eq.f32.partialorder %v809, 1.0
    %v811 = vsel %vm810, 0.6, -16.0
    %v812 = vsel %vm800, 1, 0
    %vm813 = vcmp.eq.s32.totalorder %v812, 1
    %v814 = vsel %vm813, %v675, 0.0
    %v815 = vsel %vm133, %v814, 0.0
    %v816 = vrot.slane %v815, 4
    %v817 = vadd.f32 %v815, %v816
    %v818 = vrot.slane %v817, 2
    %v819 = vadd.f32 %v817, %v818
    %v820 = vrot.slane %v819, 1
    %v821 = vadd.f32 %v819, %v820
    %v822 = vsel %vm813, %v676, 0.0
    %v823 = vsel %vm128, %v822, 0.0
    %v824 = vrot.slane %v823, 4
    %v825 = vadd.f32 %v823, %v824
    %v826 = vrot.slane %v825, 2
    %v827 = vadd.f32 %v825, %v826
    %v828 = vrot.slane %v827, 1
    %v829 = vadd.f32 %v827, %v828
    %v830 = vsel %vm800, %v775, 0.0
    %v831 = vrot.slane %v830, 4
    %v832 = vadd.f32 %v830, %v831
    %v833 = vrot.slane %v832, 2
    %v834 = vadd.f32 %v832, %v833
    %v835 = vrot.slane %v834, 1
    %v836 = vadd.f32 %v834, %v835
    %v837 = vmul.f32 %v811, %v741
    %v838 = vadd.f32 %v829, %v837
    %v839 = vmul.f32 %v821, %v757
    %v840 = vsel %vm38, %v839, 0.0
    %v841 = vsel %vm110, %v840, 0.0
    %842 = vadd.xlane.f32.xlu0 %v841
    %v843 = vpop.xlane.xlu0 %842
    %v844 = vsel %vm38, %v843, 0.0
    %v845 = vsel %vm110, %v844, 0.0
    %v846 = vrot.slane %v845, 4
    %v847 = vadd.f32 %v845, %v846
    %v848 = vrot.slane %v847, 2
    %v849 = vadd.f32 %v847, %v848
    %v850 = vrot.slane %v849, 1
    %v851 = vadd.f32 %v849, %v850
    %v852 = vsel %vm54, %v843, 0.0
    %v853 = vsel %vm110, %v852, 0.0
    %v854 = vrot.slane %v853, 4
    %v855 = vadd.f32 %v853, %v854
    %v856 = vrot.slane %v855, 2
    %v857 = vadd.f32 %v855, %v856
    %v858 = vrot.slane %v857, 1
    %v859 = vadd.f32 %v857, %v858
    %v860 = vmul.f32 %v851, %v859
    %v861 = vadd.f32 %v836, 1.0
    %v862 = vrcp.pop %v861
    %v863 = vmul.f32 %v860, %v862
    %v864 = vsub.f32 %v821, %v863
    %v865 = vlaneseq
    %v866 = vshrl.u32 %v865, 7
    %v867 = vsub.s32 0, %v866
    %v868 = vrot.slane %v838, %v867
    %v869 = vsel %vm55, %v868, 0.0
    %v870 = vsel %vm105, %v869, 0.0
    %871 = vadd.xlane.f32.xlu0 %v870
    %v872 = vpop.xlane.xlu0 %871
    %v873 = vsel %vm54, %v872, 0.0
    %v874 = vsel %vm110, %v873, 0.0
    %v875 = vrot.slane %v874, 4
    %v876 = vadd.f32 %v874, %v875
    %v877 = vrot.slane %v876, 2
    %v878 = vadd.f32 %v876, %v877
    %v879 = vrot.slane %v878, 1
    %v880 = vadd.f32 %v878, %v879
    %v881 = vmul.f32 %v864, %v880
    %v882 = vsel %vm38, %v881, 0.0
    %v883 = vsel %vm110, %v882, 0.0
    %884 = vadd.xlane.f32.xlu0 %v883
    %v885 = vpop.xlane.xlu0 %884
    %v886 = vsel %vm55, %v885, 0.0
    %v887 = vsel %vm105, %v886, 0.0
    %v888 = vrot.slane %v887, 4
    %v889 = vadd.f32 %v887, %v888
    %v890 = vrot.slane %v889, 2
    %v891 = vadd.f32 %v889, %v890
    %v892 = vrot.slane %v891, 1
    %v893 = vadd.f32 %v891, %v892
    %v894 = vadd.f32 %v674, %v766
    %v895 = vsel %vm813, %v894, %v674
    %v896 = vsel %vm813, %v864, %v675
    %v897 = vsel %vm813, %v868, %v676
    %v898 = vsel %vm813, %v893, %v677
    %v899 = vadd.f32 %v678, %v809
    %v900 = vsel %vm799, %v693, 0.0
    %v901 = vsel %vm74, %v900, 0.0
    %902 = vadd.xlane.f32.xlu0 %v901
    %v903 = vpop.xlane.xlu0 %902
    %v904 = vsel %vm799, %v692, 0.0
    %v905 = vsel %vm80, %v904, 0.0
    %906 = vadd.xlane.f32.xlu0 %v905
    %v907 = vpop.xlane.xlu0 %906
    %v908 = vmul.f32 %v903, %v907
    %v909 = vadd.f32 %v908, %v809
    %v910 = vadd.f32 %v903, 1.0
    %v911 = vrcp.pop %v910
    %v912 = vmul.f32 %v909, %v911
    %v913 = vsel %vm799, %v912, %v692
    %v914 = vsel %vm799, %v910, %v693
    %915 = vst [vmem:[%s3] sm:$0xff] 0.0
    %916 = vst.msk [vmem:[%s3] sm:$0xff] %vm133, %v896
    %918 = vrot.lane.b32.xlu0 %v895, 36
    %v919 = vpop.permute.xlu0 %918
    %vm921 = vcmask 589088
    %922 = vst.msk [vmem:[%s3] sm:$0xff] %vm921, %v919
    %924 = vrot.lane.b32.xlu0 %v898, 72
    %v925 = vpop.permute.xlu0 %924
    %vm927 = vcmask 638528
    %928 = vst.msk [vmem:[%s3] sm:$0xff] %vm927, %v925
    %930 = vrot.lane.b32.xlu0 %v897, 78
    %v931 = vpop.permute.xlu0 %930
    %vm933 = vcmask 687728
    %934 = vst.msk [vmem:[%s3] sm:$0xff] %vm933, %v931
    %v935 = vlaneseq
    %v936 = vshrl.u32 %v935, 7
    %v937 = vsub.s32 0, %v936
    %v938 = vrot.slane %v739, %v937
    %940 = vrot.lane.b32.xlu0 %v938, 84
    %v941 = vpop.permute.xlu0 %940
    %vm943 = vcmask 753312
    %944 = vst.msk [vmem:[%s3] sm:$0xff] %vm943, %v941
    %v945 = vlaneseq
    %v946 = vshrl.u32 %v945, 7
    %v947 = vsub.s32 0, %v946
    %v948 = vrot.slane %v740, %v947
    %950 = vrot.lane.b32.xlu0 %v948, 92
    %v951 = vpop.permute.xlu0 %950
    %vm953 = vcmask 818912
    %954 = vst.msk [vmem:[%s3] sm:$0xff] %vm953, %v951
    %v955 = vlaneseq
    %v956 = vshrl.u32 %v955, 7
    %v957 = vsub.s32 0, %v956
    %v958 = vrot.slane %v913, %v957
    %960 = vrot.lane.b32.xlu0 %v958, 100
    %v961 = vpop.permute.xlu0 %960
    %vm963 = vcmask 884512
    %964 = vst.msk [vmem:[%s3] sm:$0xff] %vm963, %v961
    %966 = vrot.lane.b32.xlu0 %v914, 108
    %v967 = vpop.permute.xlu0 %966
    %vm969 = vcmask 950112
    %970 = vst.msk [vmem:[%s3] sm:$0xff] %vm969, %v967
    %v971 = vlaneseq
    %v972 = vshrl.u32 %v971, 7
    %v973 = vsub.s32 0, %v972
    %v974 = vrot.slane %v725, %v973
    %vm975 = vcmask 958368
    %976 = vst.msk [vmem:[%s3] sm:$0xff] %vm975, %v974
    %v977 = vlaneseq
    %v978 = vshrl.u32 %v977, 7
    %v979 = vsub.s32 0, %v978
    %v980 = vrot.slane %v899, %v979
    %vm981 = vcmask 966568
    %982 = vst.msk [vmem:[%s3] sm:$0xff] %vm981, %v980
    // Predicated region
    $region18: #{bandit_forward.3} parent=1 // pred_check
      _
    $region19: #{bandit_forward.3} parent=1 // pred_check_branch
      %984 = sbr.rel (0) target = $region21
    $region20: #{bandit_forward.3} parent=1 // pred_region
      _
    $region21: #{bandit_forward.3} parent=1 // pred_fallthru
      _
    // Predicated region
    $region22: #{bandit_forward.3} parent=1 // pred_check
      _
    $region23: #{bandit_forward.3} parent=1 // pred_check_branch
      %986 = sbr.rel (0) target = $region25
    $region24: #{bandit_forward.3} parent=1 // pred_region
      _
    $region25: #{bandit_forward.3} parent=1 // pred_fallthru
      _
    %987 = vsyncpa [#allocation3], 1

</llo_original>
